<compile_context>
chip_gen: v5e
topology: v5e:2x2
jax: 0.10.0
libtpu: 0.0.40
codegen_flags: <defaults>
</compile_context>

<pallas_src>
import functools

import jax
import jax.numpy as jnp
from jax.experimental import pallas as pl
from jax.experimental.pallas import tpu as pltpu

LANE = 128      # TPU lane width (last-dim granularity)
SUBLANE = 16    # row granularity (covers bf16's 16-row sublane packing)


def _round_up(x, m):
    return (x + m - 1) // m * m


def _cdiv(a, b):
    return -(-a // b)


def _fcnet_kernel(*refs, num_hidden, bf16_epilogue):
    """Fused MLP on one batch tile.

    refs = (x_ref, w0, b0, w1, b1, ..., wcl, bcl, o_ref)
      x   : input dtype (TB, F_pad)   -- cast to bf16 right after the load
      w_i : bf16 (in_pad, out_pad)    -- VMEM-resident across all grid steps
      b_i : f32  (1, out_pad)
      o   : f32  (TB, out_pad)
    Matmuls run bf16 on the MXU with f32 accumulation. The bias-add / ReLU
    epilogue is bf16 on chips with a bf16 VPU (v6e/v7x), f32 otherwise (v5e).
    """
    x_ref = refs[0]
    o_ref = refs[-1]
    params = refs[1:-1]

    # x crosses HBM exactly once, in its original dtype; bf16 cast is in-VMEM.
    h = x_ref[...].astype(jnp.bfloat16)
    for layer in range(num_hidden):
        w = params[2 * layer][...]
        b = params[2 * layer + 1][...]
        acc = jnp.dot(h, w, preferred_element_type=jnp.float32)
        if bf16_epilogue:
            # bf16 VPU path (v6e/v7x): halves VALU work + vreg pressure.
            h = jnp.maximum(acc.astype(jnp.bfloat16) + b.astype(jnp.bfloat16), 0.0)
        else:
            # v5e has no bf16 VALU: keep the epilogue in f32, downcast after.
            h = jnp.maximum(acc + b, 0.0).astype(jnp.bfloat16)
    w = params[-2][...]
    b = params[-1][...]
    out = jnp.dot(h, w, preferred_element_type=jnp.float32) + b
    o_ref[...] = out.astype(o_ref.dtype)


def init_linear_params(key, in_feats, out_feats):
    """Deterministic PyTorch-style init: U(-1/sqrt(fan_in), 1/sqrt(fan_in))."""
    kw, kb = jax.random.split(key)
    bound = 1.0 / jnp.sqrt(jnp.float32(in_feats))
    w = jax.random.uniform(kw, (out_feats, in_feats), jnp.float32, -bound, bound)
    b = jax.random.uniform(kb, (out_feats,), jnp.float32, -bound, bound)
    return w, b


def prepare_fcnet_params(raw_params):
    """Pre-transpose + zero-pad layer params ONCE (not per forward pass).

    raw_params: list of (w, b) in PyTorch layout, w: (out, in) f32, b: (out,) f32.
    Returns list of (w_t, b) with
      w_t : bf16 (in_pad, out_pad), in/out padded to multiples of 128
      b   : f32  (1, out_pad)
    Zero padding keeps the math exact: padded activation columns stay 0 (zero
    weight cols + zero bias, ReLU(0)=0) and padded weight rows contribute 0.
    """
    packed = []
    for w, b in raw_params:
        out_d, in_d = w.shape
        in_pad = _round_up(in_d, LANE)
        out_pad = _round_up(out_d, LANE)
        w_t = jnp.zeros((in_pad, out_pad), jnp.float32).at[:in_d, :out_d].set(w.T)
        b_p = jnp.zeros((1, out_pad), jnp.float32).at[0, :out_d].set(b)
        packed.append((w_t.astype(jnp.bfloat16), b_p))
    return packed


def _chip_config():
    """Per-generation tiling / VMEM budget / epilogue dtype."""
    try:
        kind = jax.devices()[0].device_kind.lower()
    except Exception:
        kind = ""
    try:
        vmem_phys = int(pltpu.get_tpu_info().vmem_capacity_bytes)
    except Exception:
        vmem_phys = 64 * 1024 * 1024            # conservative: assume v7x-sized VMEM
    if vmem_phys >= 100 * 1024 * 1024:          # v5e / v6e: 128 MiB physical
        vmem_limit, tb_max = 64 * 1024 * 1024, 4096
    else:                                       # v7x: 64 MiB physical
        vmem_limit, tb_max = 48 * 1024 * 1024, 2048
    n_cores = 2 if "v7" in kind else 1          # v7x: 2 TensorCores per chip
    old_vpu = any(t in kind for t in ("v2", "v3", "v4", "v5"))  # no bf16 VALU
    return vmem_limit, tb_max, n_cores, (not old_vpu)


def fcnet_forward(x_nchw, packed_params, num_classes):
    """torch.flatten(x, 1) -> fused [Linear+ReLU]*N -> Linear classifier."""
    B = x_nchw.shape[0]
    vmem_limit, tb_max, n_cores, bf16_epilogue = _chip_config()

    # Flatten only; keep the original dtype (bf16 cast happens inside the kernel).
    x = x_nchw.reshape(B, -1)
    F = x.shape[1]
    F_pad = _round_up(F, LANE)

    num_hidden = len(packed_params) - 1
    out_pad = packed_params[-1][1].shape[1]                     # classifier lanes (>=128)
    max_w = max([F_pad] + [w.shape[1] for w, _ in packed_params])
    weight_bytes = sum(int(w.size) * 2 + int(b.size) * 4 for w, b in packed_params)

    # Clamp the batch tile so (double-buffered x + out, intermediates, resident
    # weights) stays well inside the per-chip VMEM budget.
    x_row_bytes = F_pad * jnp.dtype(x.dtype).itemsize
    per_row = 2 * x_row_bytes + 2 * 4 * out_pad + 6 * max_w + 2 * F_pad
    tb_cap = max(SUBLANE,
                 ((vmem_limit - weight_bytes - (4 << 20)) // per_row)
                 // SUBLANE * SUBLANE)
    tb_max = min(tb_max, tb_cap)

    # TB = smallest multiple of 16 >= ceil(B / n_tiles): avoids pathological
    # batch padding and gives >=2 tiles on v7x so both TensorCores get work.
    min_tiles = n_cores if B > SUBLANE else 1
    n_tiles = max(_cdiv(B, tb_max), min_tiles)
    TB = _round_up(_cdiv(B, n_tiles), SUBLANE)
    B_pad = _round_up(B, TB)
    grid = (B_pad // TB,)

    if B_pad != B or F_pad != F:
        x = jnp.pad(x, ((0, B_pad - B), (0, F_pad - F)))

    flat_params = []
    for w_t, b in packed_params:
        flat_params += [w_t, b]

    # Advisory cost estimate for XLA scheduling.
    dims = [F_pad] + [w.shape[1] for w, _ in packed_params]
    flops = 2 * B_pad * sum(dims[i] * dims[i + 1] for i in range(len(dims) - 1))
    bytes_accessed = int(x.size * jnp.dtype(x.dtype).itemsize
                         + B_pad * out_pad * 4 + weight_bytes)

    def _invoke(single_buffer_weights):
        if single_buffer_weights:
            # Constant index_map -> weights never re-fetched across batch tiles;
            # a single VMEM buffer halves their footprint (matters on v7x).
            def resident_spec(shape):
                return pl.BlockSpec(shape, lambda i: (0, 0),
                                    pipeline_mode=pl.Buffered(1))
        else:
            def resident_spec(shape):
                return pl.BlockSpec(shape, lambda i: (0, 0))

        in_specs = [pl.BlockSpec((TB, F_pad), lambda i: (i, 0))]
        for w_t, b in packed_params:
            in_specs.append(resident_spec(w_t.shape))
            in_specs.append(resident_spec(b.shape))
        out_spec = pl.BlockSpec((TB, out_pad), lambda i: (i, 0))

        y = pl.pallas_call(
            functools.partial(_fcnet_kernel, num_hidden=num_hidden,
                              bf16_epilogue=bf16_epilogue),
            out_shape=jax.ShapeDtypeStruct((B_pad, out_pad), jnp.float32),
            grid_spec=pltpu.PrefetchScalarGridSpec(
                num_scalar_prefetch=0,
                grid=grid,
                in_specs=in_specs,
                out_specs=out_spec,
            ),
            compiler_params=pltpu.CompilerParams(
                # Batch tiles are independent: lets v7x shard them over its 2
                # TCs; neutral on v5e/v6e (1 TC).
                dimension_semantics=("parallel",),
                vmem_limit_bytes=vmem_limit,
            ),
            cost_estimate=pl.CostEstimate(
                flops=flops, transcendentals=0, bytes_accessed=bytes_accessed),
        )(x, *flat_params)
        return jax.block_until_ready(y)

    try:
        y = _invoke(single_buffer_weights=True)
    except Exception:
        # Older jax without BlockSpec.pipeline_mode / Buffered(1): fall back to
        # default double-buffering (correctness identical, slightly more VMEM).
        y = _invoke(single_buffer_weights=False)

    # Strip batch padding and the lane padding of the classifier output.
    return y[:B, :num_classes]


if __name__ == "__main__":
    # Small shapes consistent with the module: NCHW input flattened to in_feats.
    B, C, H, W = 2, 4, 16, 16        # in_feats = 4*16*16 = 1024
    in_feats = C * H * W
    shapes = [256, 64]               # 64-wide hidden layer exercises lane padding
    num_classes = 10

    key = jax.random.PRNGKey(0)
    k_x, k_p = jax.random.split(key)
    x = jax.random.normal(k_x, (B, C, H, W), jnp.float32)

    # Build PyTorch-layout params, then pre-pack (transpose + pad + bf16) ONCE.
    # TODO(synk): bm.mark_skip_accum is training-time accumulation bookkeeping
    # with no forward-pass effect; nothing to translate.
    dims = [in_feats] + list(shapes) + [num_classes]
    raw_params = []
    for i in range(len(dims) - 1):
        k_p, sub = jax.random.split(k_p)
        raw_params.append(init_linear_params(sub, dims[i], dims[i + 1]))
    packed_params = prepare_fcnet_params(raw_params)

    out = fcnet_forward(x, packed_params, num_classes)
    out = jax.block_until_ready(out)

    # Pure-JAX f32 reference of the same math (bf16 MXU inputs -> looser tol).
    ref = x.reshape(B, -1)
    for w, b in raw_params[:-1]:
        ref = jnp.maximum(ref @ w.T + b, 0.0)
    ref = ref @ raw_params[-1][0].T + raw_params[-1][1]

    assert out.shape == (B, num_classes)
    assert jnp.allclose(out, ref, atol=5e-2, rtol=5e-2), float(
        jnp.max(jnp.abs(out - ref)))

    print("KERNEL_OK")
</pallas_src>

<mosaic_0001>
module attributes {stable_mosaic.version = 11 : i64} {
  func.func @_fcnet_kernel(%arg0: i32, %arg1: memref<16x1024xf32, #tpu.memory_space<vmem>>, %arg2: memref<1024x256xbf16, #tpu.memory_space<vmem>>, %arg3: memref<1x256xf32, #tpu.memory_space<vmem>>, %arg4: memref<256x128xbf16, #tpu.memory_space<vmem>>, %arg5: memref<1x128xf32, #tpu.memory_space<vmem>>, %arg6: memref<128x128xbf16, #tpu.memory_space<vmem>>, %arg7: memref<1x128xf32, #tpu.memory_space<vmem>>, %arg8: memref<16x128xf32, #tpu.memory_space<vmem>>) attributes {dimension_semantics = [#tpu.dimension_semantics<parallel>], iteration_bounds = array<i64: 1>, scalar_prefetch = 0 : i64, scratch_operands = 0 : i64, tpu.core_type = #tpu.core_type<tc>, window_params = [{transform_indices = @transform_0, window_bounds = array<i64: 16, 1024>}, {pipeline_mode = #tpu.pipeline_mode<synchronous>, transform_indices = @transform_1, window_bounds = array<i64: 1024, 256>}, {pipeline_mode = #tpu.pipeline_mode<synchronous>, transform_indices = @transform_2, window_bounds = array<i64: 1, 256>}, {pipeline_mode = #tpu.pipeline_mode<synchronous>, transform_indices = @transform_3, window_bounds = array<i64: 256, 128>}, {pipeline_mode = #tpu.pipeline_mode<synchronous>, transform_indices = @transform_4, window_bounds = array<i64: 1, 128>}, {pipeline_mode = #tpu.pipeline_mode<synchronous>, transform_indices = @transform_5, window_bounds = array<i64: 128, 128>}, {pipeline_mode = #tpu.pipeline_mode<synchronous>, transform_indices = @transform_6, window_bounds = array<i64: 1, 128>}, {transform_indices = @transform_7, window_bounds = array<i64: 16, 128>}]} {
    %c0 = arith.constant 0 : index
    %c0_0 = arith.constant 0 : index
    %0 = vector.load %arg1[%c0, %c0_0] : memref<16x1024xf32, #tpu.memory_space<vmem>>, vector<16x1024xf32>
    %1 = arith.truncf %0 : vector<16x1024xf32> to vector<16x1024xbf16>
    %c0_1 = arith.constant 0 : index
    %c0_2 = arith.constant 0 : index
    %2 = vector.load %arg2[%c0_1, %c0_2] : memref<1024x256xbf16, #tpu.memory_space<vmem>>, vector<1024x256xbf16>
    %c0_3 = arith.constant 0 : index
    %c0_4 = arith.constant 0 : index
    %3 = vector.load %arg3[%c0_3, %c0_4] : memref<1x256xf32, #tpu.memory_space<vmem>>, vector<1x256xf32>
    %cst = arith.constant dense<0.000000e+00> : vector<16x256xf32>
    %4 = tpu.matmul %1, %2, %cst {dimension_numbers = #tpu.dot_dimension_numbers<[1], [0], [0], [1], [0, 0, 1, 1], [], []>} : vector<16x1024xbf16>, vector<1024x256xbf16>, vector<16x256xf32> -> vector<16x256xf32>
    %5 = arith.truncf %4 : vector<16x256xf32> to vector<16x256xbf16>
    %6 = arith.truncf %3 : vector<1x256xf32> to vector<1x256xbf16>
    %7 = vector.broadcast %6 : vector<1x256xbf16> to vector<16x256xbf16>
    %8 = arith.addf %5, %7 : vector<16x256xbf16>
    %cst_5 = arith.constant 0.000000e+00 : bf16
    %9 = vector.broadcast %cst_5 : bf16 to vector<16x256xbf16>
    %10 = arith.maximumf %8, %9 : vector<16x256xbf16>
    %c0_6 = arith.constant 0 : index
    %c0_7 = arith.constant 0 : index
    %11 = vector.load %arg4[%c0_6, %c0_7] : memref<256x128xbf16, #tpu.memory_space<vmem>>, vector<256x128xbf16>
    %c0_8 = arith.constant 0 : index
    %c0_9 = arith.constant 0 : index
    %12 = vector.load %arg5[%c0_8, %c0_9] : memref<1x128xf32, #tpu.memory_space<vmem>>, vector<1x128xf32>
    %cst_10 = arith.constant dense<0.000000e+00> : vector<16x128xf32>
    %13 = tpu.matmul %10, %11, %cst_10 {dimension_numbers = #tpu.dot_dimension_numbers<[1], [0], [0], [1], [0, 0, 1, 1], [], []>} : vector<16x256xbf16>, vector<256x128xbf16>, vector<16x128xf32> -> vector<16x128xf32>
    %14 = arith.truncf %13 : vector<16x128xf32> to vector<16x128xbf16>
    %15 = arith.truncf %12 : vector<1x128xf32> to vector<1x128xbf16>
    %16 = vector.broadcast %15 : vector<1x128xbf16> to vector<16x128xbf16>
    %17 = arith.addf %14, %16 : vector<16x128xbf16>
    %cst_11 = arith.constant 0.000000e+00 : bf16
    %18 = vector.broadcast %cst_11 : bf16 to vector<16x128xbf16>
    %19 = arith.maximumf %17, %18 : vector<16x128xbf16>
    %c0_12 = arith.constant 0 : index
    %c0_13 = arith.constant 0 : index
    %20 = vector.load %arg6[%c0_12, %c0_13] : memref<128x128xbf16, #tpu.memory_space<vmem>>, vector<128x128xbf16>
    %c0_14 = arith.constant 0 : index
    %c0_15 = arith.constant 0 : index
    %21 = vector.load %arg7[%c0_14, %c0_15] : memref<1x128xf32, #tpu.memory_space<vmem>>, vector<1x128xf32>
    %cst_16 = arith.constant dense<0.000000e+00> : vector<16x128xf32>
    %22 = tpu.matmul %19, %20, %cst_16 {dimension_numbers = #tpu.dot_dimension_numbers<[1], [0], [0], [1], [0, 0, 1, 1], [], []>} : vector<16x128xbf16>, vector<128x128xbf16>, vector<16x128xf32> -> vector<16x128xf32>
    %23 = vector.broadcast %21 : vector<1x128xf32> to vector<16x128xf32>
    %24 = arith.addf %22, %23 : vector<16x128xf32>
    %c0_17 = arith.constant 0 : index
    %c0_18 = arith.constant 0 : index
    %25 = vector.load %arg8[%c0_17, %c0_18] : memref<16x128xf32, #tpu.memory_space<vmem>>, vector<16x128xf32>
    tpu.vector_store %arg8[%c0_17, %c0_18], %24 {strides = array<i32>} : memref<16x128xf32, #tpu.memory_space<vmem>>, vector<16x128xf32>,
    return
  }
  func.func @transform_0(%arg0: i32) -> (i32, i32) {
    %c0_i32 = arith.constant 0 : i32
    %c0_i32_0 = arith.constant 0 : i32
    return %arg0, %c0_i32 : i32, i32
  }
  func.func @transform_1(%arg0: i32) -> (i32, i32) {
    %c0_i32 = arith.constant 0 : i32
    %c0_i32_0 = arith.constant 0 : i32
    %c0_i32_1 = arith.constant 0 : i32
    return %c0_i32, %c0_i32_0 : i32, i32
  }
  func.func @transform_2(%arg0: i32) -> (i32, i32) {
    %c0_i32 = arith.constant 0 : i32
    %c0_i32_0 = arith.constant 0 : i32
    %c0_i32_1 = arith.constant 0 : i32
    return %c0_i32, %c0_i32_0 : i32, i32
  }
  func.func @transform_3(%arg0: i32) -> (i32, i32) {
    %c0_i32 = arith.constant 0 : i32
    %c0_i32_0 = arith.constant 0 : i32
    %c0_i32_1 = arith.constant 0 : i32
    return %c0_i32, %c0_i32_0 : i32, i32
  }
  func.func @transform_4(%arg0: i32) -> (i32, i32) {
    %c0_i32 = arith.constant 0 : i32
    %c0_i32_0 = arith.constant 0 : i32
    %c0_i32_1 = arith.constant 0 : i32
    return %c0_i32, %c0_i32_0 : i32, i32
  }
  func.func @transform_5(%arg0: i32) -> (i32, i32) {
    %c0_i32 = arith.constant 0 : i32
    %c0_i32_0 = arith.constant 0 : i32
    %c0_i32_1 = arith.constant 0 : i32
    return %c0_i32, %c0_i32_0 : i32, i32
  }
  func.func @transform_6(%arg0: i32) -> (i32, i32) {
    %c0_i32 = arith.constant 0 : i32
    %c0_i32_0 = arith.constant 0 : i32
    %c0_i32_1 = arith.constant 0 : i32
    return %c0_i32, %c0_i32_0 : i32, i32
  }
  func.func @transform_7(%arg0: i32) -> (i32, i32) {
    %c0_i32 = arith.constant 0 : i32
    %c0_i32_0 = arith.constant 0 : i32
    return %arg0, %c0_i32 : i32, i32
  }
}

module attributes {stable_mosaic.version = 11 : i64} {
  func.func @_fcnet_kernel(%arg0: i32, %arg1: memref<16x1024xf32, #tpu.memory_space<vmem>>, %arg2: memref<1024x256xbf16, #tpu.memory_space<vmem>>, %arg3: memref<1x256xf32, #tpu.memory_space<vmem>>, %arg4: memref<256x128xbf16, #tpu.memory_space<vmem>>, %arg5: memref<1x128xf32, #tpu.memory_space<vmem>>, %arg6: memref<128x128xbf16, #tpu.memory_space<vmem>>, %arg7: memref<1x128xf32, #tpu.memory_space<vmem>>, %arg8: memref<16x128xf32, #tpu.memory_space<vmem>>) attributes {dimension_semantics = [#tpu.dimension_semantics<parallel>], iteration_bounds = array<i64: 1>, scalar_prefetch = 0 : i64, scratch_operands = 0 : i64, tpu.core_type = #tpu.core_type<tc>, window_params = [{transform_indices = @transform_0, window_bounds = array<i64: 16, 1024>}, {pipeline_mode = #tpu.pipeline_mode<synchronous>, transform_indices = @transform_1, window_bounds = array<i64: 1024, 256>}, {pipeline_mode = #tpu.pipeline_mode<synchronous>, transform_indices = @transform_2, window_bounds = array<i64: 1, 256>}, {pipeline_mode = #tpu.pipeline_mode<synchronous>, transform_indices = @transform_3, window_bounds = array<i64: 256, 128>}, {pipeline_mode = #tpu.pipeline_mode<synchronous>, transform_indices = @transform_4, window_bounds = array<i64: 1, 128>}, {pipeline_mode = #tpu.pipeline_mode<synchronous>, transform_indices = @transform_5, window_bounds = array<i64: 128, 128>}, {pipeline_mode = #tpu.pipeline_mode<synchronous>, transform_indices = @transform_6, window_bounds = array<i64: 1, 128>}, {transform_indices = @transform_7, window_bounds = array<i64: 16, 128>}]} {
    %c0 = arith.constant 0 : index
    %c0_0 = arith.constant 0 : index
    %0 = vector.load %arg1[%c0, %c0_0] : memref<16x1024xf32, #tpu.memory_space<vmem>>, vector<16x1024xf32>
    %1 = arith.truncf %0 : vector<16x1024xf32> to vector<16x1024xbf16>
    %c0_1 = arith.constant 0 : index
    %c0_2 = arith.constant 0 : index
    %2 = vector.load %arg2[%c0_1, %c0_2] : memref<1024x256xbf16, #tpu.memory_space<vmem>>, vector<1024x256xbf16>
    %c0_3 = arith.constant 0 : index
    %c0_4 = arith.constant 0 : index
    %3 = vector.load %arg3[%c0_3, %c0_4] : memref<1x256xf32, #tpu.memory_space<vmem>>, vector<1x256xf32>
    %cst = arith.constant dense<0.000000e+00> : vector<16x256xf32>
    %4 = tpu.matmul %1, %2, %cst {dimension_numbers = #tpu.dot_dimension_numbers<[1], [0], [0], [1], [0, 0, 1, 1], [], []>} : vector<16x1024xbf16>, vector<1024x256xbf16>, vector<16x256xf32> -> vector<16x256xf32>
    %5 = arith.truncf %4 : vector<16x256xf32> to vector<16x256xbf16>
    %6 = arith.truncf %3 : vector<1x256xf32> to vector<1x256xbf16>
    %7 = vector.broadcast %6 : vector<1x256xbf16> to vector<16x256xbf16>
    %8 = arith.addf %5, %7 : vector<16x256xbf16>
    %cst_5 = arith.constant 0.000000e+00 : bf16
    %9 = vector.broadcast %cst_5 : bf16 to vector<16x256xbf16>
    %10 = arith.maximumf %8, %9 : vector<16x256xbf16>
    %c0_6 = arith.constant 0 : index
    %c0_7 = arith.constant 0 : index
    %11 = vector.load %arg4[%c0_6, %c0_7] : memref<256x128xbf16, #tpu.memory_space<vmem>>, vector<256x128xbf16>
    %c0_8 = arith.constant 0 : index
    %c0_9 = arith.constant 0 : index
    %12 = vector.load %arg5[%c0_8, %c0_9] : memref<1x128xf32, #tpu.memory_space<vmem>>, vector<1x128xf32>
    %cst_10 = arith.constant dense<0.000000e+00> : vector<16x128xf32>
    %13 = tpu.matmul %10, %11, %cst_10 {dimension_numbers = #tpu.dot_dimension_numbers<[1], [0], [0], [1], [0, 0, 1, 1], [], []>} : vector<16x256xbf16>, vector<256x128xbf16>, vector<16x128xf32> -> vector<16x128xf32>
    %14 = arith.truncf %13 : vector<16x128xf32> to vector<16x128xbf16>
    %15 = arith.truncf %12 : vector<1x128xf32> to vector<1x128xbf16>
    %16 = vector.broadcast %15 : vector<1x128xbf16> to vector<16x128xbf16>
    %17 = arith.addf %14, %16 : vector<16x128xbf16>
    %cst_11 = arith.constant 0.000000e+00 : bf16
    %18 = vector.broadcast %cst_11 : bf16 to vector<16x128xbf16>
    %19 = arith.maximumf %17, %18 : vector<16x128xbf16>
    %c0_12 = arith.constant 0 : index
    %c0_13 = arith.constant 0 : index
    %20 = vector.load %arg6[%c0_12, %c0_13] : memref<128x128xbf16, #tpu.memory_space<vmem>>, vector<128x128xbf16>
    %c0_14 = arith.constant 0 : index
    %c0_15 = arith.constant 0 : index
    %21 = vector.load %arg7[%c0_14, %c0_15] : memref<1x128xf32, #tpu.memory_space<vmem>>, vector<1x128xf32>
    %cst_16 = arith.constant dense<0.000000e+00> : vector<16x128xf32>
    %22 = tpu.matmul %19, %20, %cst_16 {dimension_numbers = #tpu.dot_dimension_numbers<[1], [0], [0], [1], [0, 0, 1, 1], [], []>} : vector<16x128xbf16>, vector<128x128xbf16>, vector<16x128xf32> -> vector<16x128xf32>
    %23 = vector.broadcast %21 : vector<1x128xf32> to vector<16x128xf32>
    %24 = arith.addf %22, %23 : vector<16x128xf32>
    %c0_17 = arith.constant 0 : index
    %c0_18 = arith.constant 0 : index
    %25 = vector.load %arg8[%c0_17, %c0_18] : memref<16x128xf32, #tpu.memory_space<vmem>>, vector<16x128xf32>
    tpu.vector_store %arg8[%c0_17, %c0_18], %24 {strides = array<i32>} : memref<16x128xf32, #tpu.memory_space<vmem>>, vector<16x128xf32>,
    return
  }
  func.func @transform_0(%arg0: i32) -> (i32, i32) {
    %c0_i32 = arith.constant 0 : i32
    %c0_i32_0 = arith.constant 0 : i32
    return %arg0, %c0_i32 : i32, i32
  }
  func.func @transform_1(%arg0: i32) -> (i32, i32) {
    %c0_i32 = arith.constant 0 : i32
    %c0_i32_0 = arith.constant 0 : i32
    %c0_i32_1 = arith.constant 0 : i32
    return %c0_i32, %c0_i32_0 : i32, i32
  }
  func.func @transform_2(%arg0: i32) -> (i32, i32) {
    %c0_i32 = arith.constant 0 : i32
    %c0_i32_0 = arith.constant 0 : i32
    %c0_i32_1 = arith.constant 0 : i32
    return %c0_i32, %c0_i32_0 : i32, i32
  }
  func.func @transform_3(%arg0: i32) -> (i32, i32) {
    %c0_i32 = arith.constant 0 : i32
    %c0_i32_0 = arith.constant 0 : i32
    %c0_i32_1 = arith.constant 0 : i32
    return %c0_i32, %c0_i32_0 : i32, i32
  }
  func.func @transform_4(%arg0: i32) -> (i32, i32) {
    %c0_i32 = arith.constant 0 : i32
    %c0_i32_0 = arith.constant 0 : i32
    %c0_i32_1 = arith.constant 0 : i32
    return %c0_i32, %c0_i32_0 : i32, i32
  }
  func.func @transform_5(%arg0: i32) -> (i32, i32) {
    %c0_i32 = arith.constant 0 : i32
    %c0_i32_0 = arith.constant 0 : i32
    %c0_i32_1 = arith.constant 0 : i32
    return %c0_i32, %c0_i32_0 : i32, i32
  }
  func.func @transform_6(%arg0: i32) -> (i32, i32) {
    %c0_i32 = arith.constant 0 : i32
    %c0_i32_0 = arith.constant 0 : i32
    %c0_i32_1 = arith.constant 0 : i32
    return %c0_i32, %c0_i32_0 : i32, i32
  }
  func.func @transform_7(%arg0: i32) -> (i32, i32) {
    %c0_i32 = arith.constant 0 : i32
    %c0_i32_0 = arith.constant 0 : i32
    return %arg0, %c0_i32 : i32, i32
  }
}

</mosaic_0001>

<llo_original>
// kernel: tpu_custom_call.1
$region0: #{tpu_custom_call.1}
  #allocation0 [shape = 'u32[]', space=smem, size = 0x4, offset = 0x4, fixed_abs, tag = 'smem constant byte address 0x4 - core index']
  #allocation1 [shape = 'u32[72,128]{1,0:T(1,128)}', space=vmem, size = 0x9000, scoped, tag = 'internal scratch']
  %s0 = inlined_call_operand.hbm [shape: f32[16,1024], index: 0, kind: input, shape index: {}]
  %s1 = inlined_call_operand.hbm [shape: bf16[1024,256], index: 1, kind: input, shape index: {}]
  %s2 = inlined_call_operand.hbm [shape: f32[1,256], index: 2, kind: input, shape index: {}]
  %s3 = inlined_call_operand.hbm [shape: bf16[256,128], index: 3, kind: input, shape index: {}]
  %s4 = inlined_call_operand.vmem [shape: f32[1,128], index: 4, kind: input, shape index: {}]
  %s5 = inlined_call_operand.hbm [shape: bf16[128,128], index: 5, kind: input, shape index: {}]
  %s6 = inlined_call_operand.vmem [shape: f32[1,128], index: 6, kind: input, shape index: {}]
  %s7 = inlined_call_operand.hbm [shape: f32[16,128], index: 7, kind: output, shape index: {}]
  %s8 = sld [smem:[#allocation0]]
  $region58: #{tpu_custom_call.1} parent=0
    _
  %s10 = ssub.s32 1, %s8
  %s11 = scalar_select 0, %s10, %s8
  $region1: #{tpu_custom_call.1} parent=0
    #allocation2 [shape = 'u8[65536]{0}', space=vmem, size = 0x10000, scoped, tag = 'input window, operand 0, single buffered']
    #allocation3 [shape = 's32[1]{0}', space=sflag, size = 0x4, scoped, tag = 'scoped memory for tpu_custom_call.1']
    #allocation4 [shape = 's32[1]{0}', space=sflag, size = 0x4, scoped, tag = 'scoped memory for tpu_custom_call.1']
    #allocation5 [shape = 'u8[524288]{0}', space=vmem, size = 0x80000, scoped, tag = 'input window, operand 1, single buffered']
    #allocation6 [shape = 's32[1]{0}', space=sflag, size = 0x4, scoped, tag = 'scoped memory for tpu_custom_call.1']
    #allocation7 [shape = 'u8[1024]{0}', space=vmem, size = 0x400, scoped, tag = 'input window, operand 2, single buffered']
    #allocation8 [shape = 'u8[65536]{0}', space=vmem, size = 0x10000, scoped, tag = 'input window, operand 3, single buffered']
    #allocation9 [shape = 's32[1]{0}', space=sflag, size = 0x4, scoped, tag = 'scoped memory for tpu_custom_call.1']
    #allocation10 [shape = 'u8[32768]{0}', space=vmem, size = 0x8000, scoped, tag = 'input window, operand 5, single buffered']
    #allocation11 [shape = 'u8[8192]{0}', space=vmem, size = 0x2000, scoped, tag = 'output window, operand 0, single buffered']
    %12 = vsyncpa [#allocation3], 0
    %13 = vsyncpa [#allocation6], 0
    %14 = vsyncpa [#allocation9], 0
    %15 = vsyncpa [#allocation4], 0
    // Predicated region
    $region2: #{tpu_custom_call.1} parent=1 // pred_check
      _
    $region3: #{tpu_custom_call.1} parent=1 // pred_check_branch
      %17 = sbr.rel (0) target = $region5
    $region4: #{tpu_custom_call.1} parent=1 // pred_region
      %19 = vsyncadd [#allocation3], 0
      %s20 = sshll.u32 %s0, 4
      %s21 = int_to_ptr.hbm [resolvable:$true] %s20
      %s22 = sshll.u32 [#allocation2], 4
      %s23 = int_to_ptr.vmem [resolvable:$true] %s22
      %28 = dma.hbm_to_vmem [thread:$0]  %s21, 2048, %s23, [#allocation3], 1024, 1024, 64
    $region5: #{tpu_custom_call.1} parent=1 // pred_fallthru
      _
    // Predicated region
    $region6: #{tpu_custom_call.1} parent=1 // pred_check
      _
    $region7: #{tpu_custom_call.1} parent=1 // pred_check_branch
      %30 = sbr.rel (0) target = $region9
    $region8: #{tpu_custom_call.1} parent=1 // pred_region
      %32 = vsyncadd [#allocation6], 0
      %s33 = sshll.u32 %s1, 4
      %s34 = int_to_ptr.hbm [resolvable:$true] %s33
      %s35 = sshll.u32 [#allocation5], 4
      %s36 = int_to_ptr.vmem [resolvable:$true] %s35
      %41 = dma.hbm_to_vmem [thread:$0]  %s34, 16384, %s36, [#allocation6], 128, 128, 8
    $region9: #{tpu_custom_call.1} parent=1 // pred_fallthru
      _
    // Predicated region
    $region10: #{tpu_custom_call.1} parent=1 // pred_check
      _
    $region11: #{tpu_custom_call.1} parent=1 // pred_check_branch
      %43 = sbr.rel (0) target = $region13
    $region12: #{tpu_custom_call.1} parent=1 // pred_region
      %45 = vsyncadd [#allocation6], 0
      %s47 = sshll.u32 %s2, 4
      %s48 = int_to_ptr.hbm [resolvable:$true] %s47
      %s49 = sshll.u32 [#allocation7], 4
      %s50 = int_to_ptr.vmem [resolvable:$true] %s49
      %52 = dma.hbm_to_vmem [thread:$0]  %s48, 32, %s50, [#allocation6]
    $region13: #{tpu_custom_call.1} parent=1 // pred_fallthru
      _
    // Predicated region
    $region14: #{tpu_custom_call.1} parent=1 // pred_check
      _
    $region15: #{tpu_custom_call.1} parent=1 // pred_check_branch
      %54 = sbr.rel (0) target = $region17
    $region16: #{tpu_custom_call.1} parent=1 // pred_region
      %56 = vsyncadd [#allocation9], 0
      %s57 = sshll.u32 %s3, 4
      %s58 = int_to_ptr.hbm [resolvable:$true] %s57
      %s59 = sshll.u32 [#allocation8], 4
      %s60 = int_to_ptr.vmem [resolvable:$true] %s59
      %65 = dma.hbm_to_vmem [thread:$0]  %s58, 2048, %s60, [#allocation9], 64, 64, 4
    $region17: #{tpu_custom_call.1} parent=1 // pred_fallthru
      _
    // Predicated region
    $region18: #{tpu_custom_call.1} parent=1 // pred_check
      _
    $region19: #{tpu_custom_call.1} parent=1 // pred_check_branch
      %67 = sbr.rel (0) target = $region21
    $region20: #{tpu_custom_call.1} parent=1 // pred_region
      _
    $region21: #{tpu_custom_call.1} parent=1 // pred_fallthru
      _
    // Predicated region
    $region22: #{tpu_custom_call.1} parent=1 // pred_check
      _
    $region23: #{tpu_custom_call.1} parent=1 // pred_check_branch
      %69 = sbr.rel (0) target = $region25
    $region24: #{tpu_custom_call.1} parent=1 // pred_region
      %71 = vsyncadd [#allocation9], 0
      %s72 = sshll.u32 %s5, 4
      %s73 = int_to_ptr.hbm [resolvable:$true] %s72
      %s74 = sshll.u32 [#allocation10], 4
      %s75 = int_to_ptr.vmem [resolvable:$true] %s74
      %80 = dma.hbm_to_vmem [thread:$0]  %s73, 1024, %s75, [#allocation9], 64, 64, 4
    $region25: #{tpu_custom_call.1} parent=1 // pred_fallthru
      _
    // Predicated region
    $region26: #{tpu_custom_call.1} parent=1 // pred_check
      _
    $region27: #{tpu_custom_call.1} parent=1 // pred_check_branch
      %82 = sbr.rel (0) target = $region29
    $region28: #{tpu_custom_call.1} parent=1 // pred_region
      _
    $region29: #{tpu_custom_call.1} parent=1 // pred_fallthru
      _
    // Predicated region
    $region30: #{tpu_custom_call.1} parent=1 // pred_check
      _
    $region31: #{tpu_custom_call.1} parent=1 // pred_check_branch
      %84 = sbr.rel (0) target = $region33
    $region32: #{tpu_custom_call.1} parent=1 // pred_region
      %86 = dma.done [#allocation3], 2048
    $region33: #{tpu_custom_call.1} parent=1 // pred_fallthru
      _
    // Predicated region
    $region34: #{tpu_custom_call.1} parent=1 // pred_check
      _
    $region35: #{tpu_custom_call.1} parent=1 // pred_check_branch
      %88 = sbr.rel (0) target = $region37
    $region36: #{tpu_custom_call.1} parent=1 // pred_region
      %90 = dma.done [#allocation6], 16384
    $region37: #{tpu_custom_call.1} parent=1 // pred_fallthru
      _
    // Predicated region
    $region38: #{tpu_custom_call.1} parent=1 // pred_check
      _
    $region39: #{tpu_custom_call.1} parent=1 // pred_check_branch
      %92 = sbr.rel (0) target = $region41
    $region40: #{tpu_custom_call.1} parent=1 // pred_region
      %94 = dma.done [#allocation6], 32
    $region41: #{tpu_custom_call.1} parent=1 // pred_fallthru
      _
    // Predicated region
    $region42: #{tpu_custom_call.1} parent=1 // pred_check
      _
    $region43: #{tpu_custom_call.1} parent=1 // pred_check_branch
      %96 = sbr.rel (0) target = $region45
    $region44: #{tpu_custom_call.1} parent=1 // pred_region
      %98 = dma.done [#allocation9], 2048
    $region45: #{tpu_custom_call.1} parent=1 // pred_fallthru
      _
    // Predicated region
    $region46: #{tpu_custom_call.1} parent=1 // pred_check
      _
    $region47: #{tpu_custom_call.1} parent=1 // pred_check_branch
      %100 = sbr.rel (0) target = $region49
    $region48: #{tpu_custom_call.1} parent=1 // pred_region
      %102 = dma.done [#allocation9], 1024
    $region49: #{tpu_custom_call.1} parent=1 // pred_fallthru
      _
    %v103 = vld [vmem:[#allocation2] sm:$0xff]
    %v104 = vld [vmem:[#allocation2 + $0x8] sm:$0xff]
    %v105 = vld [vmem:[#allocation2 + $0x10] sm:$0xff]
    %v106 = vld [vmem:[#allocation2 + $0x18] sm:$0xff]
    %v107 = vld [vmem:[#allocation2 + $0x20] sm:$0xff]
    %v108 = vld [vmem:[#allocation2 + $0x28] sm:$0xff]
    %v109 = vld [vmem:[#allocation2 + $0x30] sm:$0xff]
    %v110 = vld [vmem:[#allocation2 + $0x38] sm:$0xff]
    %v111 = vld [vmem:[#allocation2 + $0x40] sm:$0xff]
    %v112 = vld [vmem:[#allocation2 + $0x48] sm:$0xff]
    %v113 = vld [vmem:[#allocation2 + $0x50] sm:$0xff]
    %v114 = vld [vmem:[#allocation2 + $0x58] sm:$0xff]
    %v115 = vld [vmem:[#allocation2 + $0x60] sm:$0xff]
    %v116 = vld [vmem:[#allocation2 + $0x68] sm:$0xff]
    %v117 = vld [vmem:[#allocation2 + $0x70] sm:$0xff]
    %v118 = vld [vmem:[#allocation2 + $0x78] sm:$0xff]
    %v119 = vpack.c.bf16 %v111, %v103
    %v120 = vpack.c.bf16 %v112, %v104
    %v121 = vpack.c.bf16 %v113, %v105
    %v122 = vpack.c.bf16 %v114, %v106
    %v123 = vpack.c.bf16 %v115, %v107
    %v124 = vpack.c.bf16 %v116, %v108
    %v125 = vpack.c.bf16 %v117, %v109
    %v126 = vpack.c.bf16 %v118, %v110
    %v127 = vld [vmem:[#allocation5] sm:$0xff]
    %v128 = vld [vmem:[#allocation5 + $0x8] sm:$0xff]
    %v129 = vld [vmem:[#allocation5 + $0x10] sm:$0xff]
    %v130 = vld [vmem:[#allocation5 + $0x18] sm:$0xff]
    %v131 = vld [vmem:[#allocation5 + $0x20] sm:$0xff]
    %v132 = vld [vmem:[#allocation5 + $0x28] sm:$0xff]
    %v133 = vld [vmem:[#allocation5 + $0x30] sm:$0xff]
    %v134 = vld [vmem:[#allocation5 + $0x38] sm:$0xff]
    %v135 = vld [vmem:[#allocation5 + $0x40] sm:$0xff]
    %v136 = vld [vmem:[#allocation5 + $0x48] sm:$0xff]
    %v137 = vld [vmem:[#allocation5 + $0x50] sm:$0xff]
    %v138 = vld [vmem:[#allocation5 + $0x58] sm:$0xff]
    %v139 = vld [vmem:[#allocation5 + $0x60] sm:$0xff]
    %v140 = vld [vmem:[#allocation5 + $0x68] sm:$0xff]
    %v141 = vld [vmem:[#allocation5 + $0x70] sm:$0xff]
    %v142 = vld [vmem:[#allocation5 + $0x78] sm:$0xff]
    %v143 = vld [vmem:[#allocation5 + $0x80] sm:$0xff]
    %v144 = vld [vmem:[#allocation5 + $0x88] sm:$0xff]
    %v145 = vld [vmem:[#allocation5 + $0x90] sm:$0xff]
    %v146 = vld [vmem:[#allocation5 + $0x98] sm:$0xff]
    %v147 = vld [vmem:[#allocation5 + $0xa0] sm:$0xff]
    %v148 = vld [vmem:[#allocation5 + $0xa8] sm:$0xff]
    %v149 = vld [vmem:[#allocation5 + $0xb0] sm:$0xff]
    %v150 = vld [vmem:[#allocation5 + $0xb8] sm:$0xff]
    %v151 = vld [vmem:[#allocation5 + $0xc0] sm:$0xff]
    %v152 = vld [vmem:[#allocation5 + $0xc8] sm:$0xff]
    %v153 = vld [vmem:[#allocation5 + $0xd0] sm:$0xff]
    %v154 = vld [vmem:[#allocation5 + $0xd8] sm:$0xff]
    %v155 = vld [vmem:[#allocation5 + $0xe0] sm:$0xff]
    %v156 = vld [vmem:[#allocation5 + $0xe8] sm:$0xff]
    %v157 = vld [vmem:[#allocation5 + $0xf0] sm:$0xff]
    %v158 = vld [vmem:[#allocation5 + $0xf8] sm:$0xff]
    %v159 = vld [vmem:[#allocation5 + $0x100] sm:$0xff]
    %v160 = vld [vmem:[#allocation5 + $0x108] sm:$0xff]
    %v161 = vld [vmem:[#allocation5 + $0x110] sm:$0xff]
    %v162 = vld [vmem:[#allocation5 + $0x118] sm:$0xff]
    %v163 = vld [vmem:[#allocation5 + $0x120] sm:$0xff]
    %v164 = vld [vmem:[#allocation5 + $0x128] sm:$0xff]
    %v165 = vld [vmem:[#allocation5 + $0x130] sm:$0xff]
    %v166 = vld [vmem:[#allocation5 + $0x138] sm:$0xff]
    %v167 = vld [vmem:[#allocation5 + $0x140] sm:$0xff]
    %v168 = vld [vmem:[#allocation5 + $0x148] sm:$0xff]
    %v169 = vld [vmem:[#allocation5 + $0x150] sm:$0xff]
    %v170 = vld [vmem:[#allocation5 + $0x158] sm:$0xff]
    %v171 = vld [vmem:[#allocation5 + $0x160] sm:$0xff]
    %v172 = vld [vmem:[#allocation5 + $0x168] sm:$0xff]
    %v173 = vld [vmem:[#allocation5 + $0x170] sm:$0xff]
    %v174 = vld [vmem:[#allocation5 + $0x178] sm:$0xff]
    %v175 = vld [vmem:[#allocation5 + $0x180] sm:$0xff]
    %v176 = vld [vmem:[#allocation5 + $0x188] sm:$0xff]
    %v177 = vld [vmem:[#allocation5 + $0x190] sm:$0xff]
    %v178 = vld [vmem:[#allocation5 + $0x198] sm:$0xff]
    %v179 = vld [vmem:[#allocation5 + $0x1a0] sm:$0xff]
    %v180 = vld [vmem:[#allocation5 + $0x1a8] sm:$0xff]
    %v181 = vld [vmem:[#allocation5 + $0x1b0] sm:$0xff]
    %v182 = vld [vmem:[#allocation5 + $0x1b8] sm:$0xff]
    %v183 = vld [vmem:[#allocation5 + $0x1c0] sm:$0xff]
    %v184 = vld [vmem:[#allocation5 + $0x1c8] sm:$0xff]
    %v185 = vld [vmem:[#allocation5 + $0x1d0] sm:$0xff]
    %v186 = vld [vmem:[#allocation5 + $0x1d8] sm:$0xff]
    %v187 = vld [vmem:[#allocation5 + $0x1e0] sm:$0xff]
    %v188 = vld [vmem:[#allocation5 + $0x1e8] sm:$0xff]
    %v189 = vld [vmem:[#allocation5 + $0x1f0] sm:$0xff]
    %v190 = vld [vmem:[#allocation5 + $0x1f8] sm:$0xff]
    %v191 = vld [vmem:[#allocation5 + $0x200] sm:$0xff]
    %v192 = vld [vmem:[#allocation5 + $0x208] sm:$0xff]
    %v193 = vld [vmem:[#allocation5 + $0x210] sm:$0xff]
    %v194 = vld [vmem:[#allocation5 + $0x218] sm:$0xff]
    %v195 = vld [vmem:[#allocation5 + $0x220] sm:$0xff]
    %v196 = vld [vmem:[#allocation5 + $0x228] sm:$0xff]
    %v197 = vld [vmem:[#allocation5 + $0x230] sm:$0xff]
    %v198 = vld [vmem:[#allocation5 + $0x238] sm:$0xff]
    %v199 = vld [vmem:[#allocation5 + $0x240] sm:$0xff]
    %v200 = vld [vmem:[#allocation5 + $0x248] sm:$0xff]
    %v201 = vld [vmem:[#allocation5 + $0x250] sm:$0xff]
    %v202 = vld [vmem:[#allocation5 + $0x258] sm:$0xff]
    %v203 = vld [vmem:[#allocation5 + $0x260] sm:$0xff]
    %v204 = vld [vmem:[#allocation5 + $0x268] sm:$0xff]
    %v205 = vld [vmem:[#allocation5 + $0x270] sm:$0xff]
    %v206 = vld [vmem:[#allocation5 + $0x278] sm:$0xff]
    %v207 = vld [vmem:[#allocation5 + $0x280] sm:$0xff]
    %v208 = vld [vmem:[#allocation5 + $0x288] sm:$0xff]
    %v209 = vld [vmem:[#allocation5 + $0x290] sm:$0xff]
    %v210 = vld [vmem:[#allocation5 + $0x298] sm:$0xff]
    %v211 = vld [vmem:[#allocation5 + $0x2a0] sm:$0xff]
    %v212 = vld [vmem:[#allocation5 + $0x2a8] sm:$0xff]
    %v213 = vld [vmem:[#allocation5 + $0x2b0] sm:$0xff]
    %v214 = vld [vmem:[#allocation5 + $0x2b8] sm:$0xff]
    %v215 = vld [vmem:[#allocation5 + $0x2c0] sm:$0xff]
    %v216 = vld [vmem:[#allocation5 + $0x2c8] sm:$0xff]
    %v217 = vld [vmem:[#allocation5 + $0x2d0] sm:$0xff]
    %v218 = vld [vmem:[#allocation5 + $0x2d8] sm:$0xff]
    %v219 = vld [vmem:[#allocation5 + $0x2e0] sm:$0xff]
    %v220 = vld [vmem:[#allocation5 + $0x2e8] sm:$0xff]
    %v221 = vld [vmem:[#allocation5 + $0x2f0] sm:$0xff]
    %v222 = vld [vmem:[#allocation5 + $0x2f8] sm:$0xff]
    %v223 = vld [vmem:[#allocation5 + $0x300] sm:$0xff]
    %v224 = vld [vmem:[#allocation5 + $0x308] sm:$0xff]
    %v225 = vld [vmem:[#allocation5 + $0x310] sm:$0xff]
    %v226 = vld [vmem:[#allocation5 + $0x318] sm:$0xff]
    %v227 = vld [vmem:[#allocation5 + $0x320] sm:$0xff]
    %v228 = vld [vmem:[#allocation5 + $0x328] sm:$0xff]
    %v229 = vld [vmem:[#allocation5 + $0x330] sm:$0xff]
    %v230 = vld [vmem:[#allocation5 + $0x338] sm:$0xff]
    %v231 = vld [vmem:[#allocation5 + $0x340] sm:$0xff]
    %v232 = vld [vmem:[#allocation5 + $0x348] sm:$0xff]
    %v233 = vld [vmem:[#allocation5 + $0x350] sm:$0xff]
    %v234 = vld [vmem:[#allocation5 + $0x358] sm:$0xff]
    %v235 = vld [vmem:[#allocation5 + $0x360] sm:$0xff]
    %v236 = vld [vmem:[#allocation5 + $0x368] sm:$0xff]
    %v237 = vld [vmem:[#allocation5 + $0x370] sm:$0xff]
    %v238 = vld [vmem:[#allocation5 + $0x378] sm:$0xff]
    %v239 = vld [vmem:[#allocation5 + $0x380] sm:$0xff]
    %v240 = vld [vmem:[#allocation5 + $0x388] sm:$0xff]
    %v241 = vld [vmem:[#allocation5 + $0x390] sm:$0xff]
    %v242 = vld [vmem:[#allocation5 + $0x398] sm:$0xff]
    %v243 = vld [vmem:[#allocation5 + $0x3a0] sm:$0xff]
    %v244 = vld [vmem:[#allocation5 + $0x3a8] sm:$0xff]
    %v245 = vld [vmem:[#allocation5 + $0x3b0] sm:$0xff]
    %v246 = vld [vmem:[#allocation5 + $0x3b8] sm:$0xff]
    %v247 = vld [vmem:[#allocation5 + $0x3c0] sm:$0xff]
    %v248 = vld [vmem:[#allocation5 + $0x3c8] sm:$0xff]
    %v249 = vld [vmem:[#allocation5 + $0x3d0] sm:$0xff]
    %v250 = vld [vmem:[#allocation5 + $0x3d8] sm:$0xff]
    %v251 = vld [vmem:[#allocation5 + $0x3e0] sm:$0xff]
    %v252 = vld [vmem:[#allocation5 + $0x3e8] sm:$0xff]
    %v253 = vld [vmem:[#allocation5 + $0x3f0] sm:$0xff]
    %v254 = vld [vmem:[#allocation5 + $0x3f8] sm:$0xff]
    %v255 = vld [vmem:[#allocation7] sm:$0x3]
    %v384 = vunpack.c.l.b16 %v127
    %v385 = vunpack.c.h.b16 %v127
    %v386 = vunpack.c.l.b16 %v128
    %v387 = vunpack.c.h.b16 %v128
    %v388 = vunpack.c.l.b16 %v129
    %v389 = vunpack.c.h.b16 %v129
    %v390 = vunpack.c.l.b16 %v130
    %v391 = vunpack.c.h.b16 %v130
    %v392 = vunpack.c.l.b16 %v131
    %v393 = vunpack.c.h.b16 %v131
    %v394 = vunpack.c.l.b16 %v132
    %v395 = vunpack.c.h.b16 %v132
    %v396 = vunpack.c.l.b16 %v133
    %v397 = vunpack.c.h.b16 %v133
    %v398 = vunpack.c.l.b16 %v134
    %v399 = vunpack.c.h.b16 %v134
    %v400 = vunpack.c.l.b16 %v135
    %v401 = vunpack.c.h.b16 %v135
    %v402 = vunpack.c.l.b16 %v136
    %v403 = vunpack.c.h.b16 %v136
    %v404 = vunpack.c.l.b16 %v137
    %v405 = vunpack.c.h.b16 %v137
    %v406 = vunpack.c.l.b16 %v138
    %v407 = vunpack.c.h.b16 %v138
    %v408 = vunpack.c.l.b16 %v139
    %v409 = vunpack.c.h.b16 %v139
    %v410 = vunpack.c.l.b16 %v140
    %v411 = vunpack.c.h.b16 %v140
    %v412 = vunpack.c.l.b16 %v141
    %v413 = vunpack.c.h.b16 %v141
    %v414 = vunpack.c.l.b16 %v142
    %v415 = vunpack.c.h.b16 %v142
    %v416 = vunpack.c.l.b16 %v143
    %v417 = vunpack.c.h.b16 %v143
    %v418 = vunpack.c.l.b16 %v144
    %v419 = vunpack.c.h.b16 %v144
    %v420 = vunpack.c.l.b16 %v145
    %v421 = vunpack.c.h.b16 %v145
    %v422 = vunpack.c.l.b16 %v146
    %v423 = vunpack.c.h.b16 %v146
    %v424 = vunpack.c.l.b16 %v147
    %v425 = vunpack.c.h.b16 %v147
    %v426 = vunpack.c.l.b16 %v148
    %v427 = vunpack.c.h.b16 %v148
    %v428 = vunpack.c.l.b16 %v149
    %v429 = vunpack.c.h.b16 %v149
    %v430 = vunpack.c.l.b16 %v150
    %v431 = vunpack.c.h.b16 %v150
    %v432 = vunpack.c.l.b16 %v151
    %v433 = vunpack.c.h.b16 %v151
    %v434 = vunpack.c.l.b16 %v152
    %v435 = vunpack.c.h.b16 %v152
    %v436 = vunpack.c.l.b16 %v153
    %v437 = vunpack.c.h.b16 %v153
    %v438 = vunpack.c.l.b16 %v154
    %v439 = vunpack.c.h.b16 %v154
    %v440 = vunpack.c.l.b16 %v155
    %v441 = vunpack.c.h.b16 %v155
    %v442 = vunpack.c.l.b16 %v156
    %v443 = vunpack.c.h.b16 %v156
    %v444 = vunpack.c.l.b16 %v157
    %v445 = vunpack.c.h.b16 %v157
    %v446 = vunpack.c.l.b16 %v158
    %v447 = vunpack.c.h.b16 %v158
    %v448 = vunpack.c.l.b16 %v159
    %v449 = vunpack.c.h.b16 %v159
    %v450 = vunpack.c.l.b16 %v160
    %v451 = vunpack.c.h.b16 %v160
    %v452 = vunpack.c.l.b16 %v161
    %v453 = vunpack.c.h.b16 %v161
    %v454 = vunpack.c.l.b16 %v162
    %v455 = vunpack.c.h.b16 %v162
    %v456 = vunpack.c.l.b16 %v163
    %v457 = vunpack.c.h.b16 %v163
    %v458 = vunpack.c.l.b16 %v164
    %v459 = vunpack.c.h.b16 %v164
    %v460 = vunpack.c.l.b16 %v165
    %v461 = vunpack.c.h.b16 %v165
    %v462 = vunpack.c.l.b16 %v166
    %v463 = vunpack.c.h.b16 %v166
    %v464 = vunpack.c.l.b16 %v167
    %v465 = vunpack.c.h.b16 %v167
    %v466 = vunpack.c.l.b16 %v168
    %v467 = vunpack.c.h.b16 %v168
    %v468 = vunpack.c.l.b16 %v169
    %v469 = vunpack.c.h.b16 %v169
    %v470 = vunpack.c.l.b16 %v170
    %v471 = vunpack.c.h.b16 %v170
    %v472 = vunpack.c.l.b16 %v171
    %v473 = vunpack.c.h.b16 %v171
    %v474 = vunpack.c.l.b16 %v172
    %v475 = vunpack.c.h.b16 %v172
    %v476 = vunpack.c.l.b16 %v173
    %v477 = vunpack.c.h.b16 %v173
    %v478 = vunpack.c.l.b16 %v174
    %v479 = vunpack.c.h.b16 %v174
    %v480 = vunpack.c.l.b16 %v175
    %v481 = vunpack.c.h.b16 %v175
    %v482 = vunpack.c.l.b16 %v176
    %v483 = vunpack.c.h.b16 %v176
    %v484 = vunpack.c.l.b16 %v177
    %v485 = vunpack.c.h.b16 %v177
    %v486 = vunpack.c.l.b16 %v178
    %v487 = vunpack.c.h.b16 %v178
    %v488 = vunpack.c.l.b16 %v179
    %v489 = vunpack.c.h.b16 %v179
    %v490 = vunpack.c.l.b16 %v180
    %v491 = vunpack.c.h.b16 %v180
    %v492 = vunpack.c.l.b16 %v181
    %v493 = vunpack.c.h.b16 %v181
    %v494 = vunpack.c.l.b16 %v182
    %v495 = vunpack.c.h.b16 %v182
    %v496 = vunpack.c.l.b16 %v183
    %v497 = vunpack.c.h.b16 %v183
    %v498 = vunpack.c.l.b16 %v184
    %v499 = vunpack.c.h.b16 %v184
    %v500 = vunpack.c.l.b16 %v185
    %v501 = vunpack.c.h.b16 %v185
    %v502 = vunpack.c.l.b16 %v186
    %v503 = vunpack.c.h.b16 %v186
    %v504 = vunpack.c.l.b16 %v187
    %v505 = vunpack.c.h.b16 %v187
    %v506 = vunpack.c.l.b16 %v188
    %v507 = vunpack.c.h.b16 %v188
    %v508 = vunpack.c.l.b16 %v189
    %v509 = vunpack.c.h.b16 %v189
    %v510 = vunpack.c.l.b16 %v190
    %v511 = vunpack.c.h.b16 %v190
    %v512 = vunpack.c.l.b16 %v191
    %v513 = vunpack.c.h.b16 %v191
    %v514 = vunpack.c.l.b16 %v192
    %v515 = vunpack.c.h.b16 %v192
    %v516 = vunpack.c.l.b16 %v193
    %v517 = vunpack.c.h.b16 %v193
    %v518 = vunpack.c.l.b16 %v194
    %v519 = vunpack.c.h.b16 %v194
    %v520 = vunpack.c.l.b16 %v195
    %v521 = vunpack.c.h.b16 %v195
    %v522 = vunpack.c.l.b16 %v196
    %v523 = vunpack.c.h.b16 %v196
    %v524 = vunpack.c.l.b16 %v197
    %v525 = vunpack.c.h.b16 %v197
    %v526 = vunpack.c.l.b16 %v198
    %v527 = vunpack.c.h.b16 %v198
    %v528 = vunpack.c.l.b16 %v199
    %v529 = vunpack.c.h.b16 %v199
    %v530 = vunpack.c.l.b16 %v200
    %v531 = vunpack.c.h.b16 %v200
    %v532 = vunpack.c.l.b16 %v201
    %v533 = vunpack.c.h.b16 %v201
    %v534 = vunpack.c.l.b16 %v202
    %v535 = vunpack.c.h.b16 %v202
    %v536 = vunpack.c.l.b16 %v203
    %v537 = vunpack.c.h.b16 %v203
    %v538 = vunpack.c.l.b16 %v204
    %v539 = vunpack.c.h.b16 %v204
    %v540 = vunpack.c.l.b16 %v205
    %v541 = vunpack.c.h.b16 %v205
    %v542 = vunpack.c.l.b16 %v206
    %v543 = vunpack.c.h.b16 %v206
    %v544 = vunpack.c.l.b16 %v207
    %v545 = vunpack.c.h.b16 %v207
    %v546 = vunpack.c.l.b16 %v208
    %v547 = vunpack.c.h.b16 %v208
    %v548 = vunpack.c.l.b16 %v209
    %v549 = vunpack.c.h.b16 %v209
    %v550 = vunpack.c.l.b16 %v210
    %v551 = vunpack.c.h.b16 %v210
    %v552 = vunpack.c.l.b16 %v211
    %v553 = vunpack.c.h.b16 %v211
    %v554 = vunpack.c.l.b16 %v212
    %v555 = vunpack.c.h.b16 %v212
    %v556 = vunpack.c.l.b16 %v213
    %v557 = vunpack.c.h.b16 %v213
    %v558 = vunpack.c.l.b16 %v214
    %v559 = vunpack.c.h.b16 %v214
    %v560 = vunpack.c.l.b16 %v215
    %v561 = vunpack.c.h.b16 %v215
    %v562 = vunpack.c.l.b16 %v216
    %v563 = vunpack.c.h.b16 %v216
    %v564 = vunpack.c.l.b16 %v217
    %v565 = vunpack.c.h.b16 %v217
    %v566 = vunpack.c.l.b16 %v218
    %v567 = vunpack.c.h.b16 %v218
    %v568 = vunpack.c.l.b16 %v219
    %v569 = vunpack.c.h.b16 %v219
    %v570 = vunpack.c.l.b16 %v220
    %v571 = vunpack.c.h.b16 %v220
    %v572 = vunpack.c.l.b16 %v221
    %v573 = vunpack.c.h.b16 %v221
    %v574 = vunpack.c.l.b16 %v222
    %v575 = vunpack.c.h.b16 %v222
    %v576 = vunpack.c.l.b16 %v223
    %v577 = vunpack.c.h.b16 %v223
    %v578 = vunpack.c.l.b16 %v224
    %v579 = vunpack.c.h.b16 %v224
    %v580 = vunpack.c.l.b16 %v225
    %v581 = vunpack.c.h.b16 %v225
    %v582 = vunpack.c.l.b16 %v226
    %v583 = vunpack.c.h.b16 %v226
    %v584 = vunpack.c.l.b16 %v227
    %v585 = vunpack.c.h.b16 %v227
    %v586 = vunpack.c.l.b16 %v228
    %v587 = vunpack.c.h.b16 %v228
    %v588 = vunpack.c.l.b16 %v229
    %v589 = vunpack.c.h.b16 %v229
    %v590 = vunpack.c.l.b16 %v230
    %v591 = vunpack.c.h.b16 %v230
    %v592 = vunpack.c.l.b16 %v231
    %v593 = vunpack.c.h.b16 %v231
    %v594 = vunpack.c.l.b16 %v232
    %v595 = vunpack.c.h.b16 %v232
    %v596 = vunpack.c.l.b16 %v233
    %v597 = vunpack.c.h.b16 %v233
    %v598 = vunpack.c.l.b16 %v234
    %v599 = vunpack.c.h.b16 %v234
    %v600 = vunpack.c.l.b16 %v235
    %v601 = vunpack.c.h.b16 %v235
    %v602 = vunpack.c.l.b16 %v236
    %v603 = vunpack.c.h.b16 %v236
    %v604 = vunpack.c.l.b16 %v237
    %v605 = vunpack.c.h.b16 %v237
    %v606 = vunpack.c.l.b16 %v238
    %v607 = vunpack.c.h.b16 %v238
    %v608 = vunpack.c.l.b16 %v239
    %v609 = vunpack.c.h.b16 %v239
    %v610 = vunpack.c.l.b16 %v240
    %v611 = vunpack.c.h.b16 %v240
    %v612 = vunpack.c.l.b16 %v241
    %v613 = vunpack.c.h.b16 %v241
    %v614 = vunpack.c.l.b16 %v242
    %v615 = vunpack.c.h.b16 %v242
    %v616 = vunpack.c.l.b16 %v243
    %v617 = vunpack.c.h.b16 %v243
    %v618 = vunpack.c.l.b16 %v244
    %v619 = vunpack.c.h.b16 %v244
    %v620 = vunpack.c.l.b16 %v245
    %v621 = vunpack.c.h.b16 %v245
    %v622 = vunpack.c.l.b16 %v246
    %v623 = vunpack.c.h.b16 %v246
    %v624 = vunpack.c.l.b16 %v247
    %v625 = vunpack.c.h.b16 %v247
    %v626 = vunpack.c.l.b16 %v248
    %v627 = vunpack.c.h.b16 %v248
    %v628 = vunpack.c.l.b16 %v249
    %v629 = vunpack.c.h.b16 %v249
    %v630 = vunpack.c.l.b16 %v250
    %v631 = vunpack.c.h.b16 %v250
    %v632 = vunpack.c.l.b16 %v251
    %v633 = vunpack.c.h.b16 %v251
    %v634 = vunpack.c.l.b16 %v252
    %v635 = vunpack.c.h.b16 %v252
    %v636 = vunpack.c.l.b16 %v253
    %v637 = vunpack.c.h.b16 %v253
    %v638 = vunpack.c.l.b16 %v254
    %v639 = vunpack.c.h.b16 %v254
    %v640 = vpack.c.b16 %v386, %v384
    %v641 = vpack.c.b16 %v387, %v385
    %v642 = vpack.c.b16 %v390, %v388
    %v643 = vpack.c.b16 %v391, %v389
    %v644 = vpack.c.b16 %v394, %v392
    %v645 = vpack.c.b16 %v395, %v393
    %v646 = vpack.c.b16 %v398, %v396
    %v647 = vpack.c.b16 %v399, %v397
    %v648 = vpack.c.b16 %v402, %v400
    %v649 = vpack.c.b16 %v403, %v401
    %v650 = vpack.c.b16 %v406, %v404
    %v651 = vpack.c.b16 %v407, %v405
    %v652 = vpack.c.b16 %v410, %v408
    %v653 = vpack.c.b16 %v411, %v409
    %v654 = vpack.c.b16 %v414, %v412
    %v655 = vpack.c.b16 %v415, %v413
    %v656 = vpack.c.b16 %v418, %v416
    %v657 = vpack.c.b16 %v419, %v417
    %v658 = vpack.c.b16 %v422, %v420
    %v659 = vpack.c.b16 %v423, %v421
    %v660 = vpack.c.b16 %v426, %v424
    %v661 = vpack.c.b16 %v427, %v425
    %v662 = vpack.c.b16 %v430, %v428
    %v663 = vpack.c.b16 %v431, %v429
    %v664 = vpack.c.b16 %v434, %v432
    %v665 = vpack.c.b16 %v435, %v433
    %v666 = vpack.c.b16 %v438, %v436
    %v667 = vpack.c.b16 %v439, %v437
    %v668 = vpack.c.b16 %v442, %v440
    %v669 = vpack.c.b16 %v443, %v441
    %v670 = vpack.c.b16 %v446, %v444
    %v671 = vpack.c.b16 %v447, %v445
    %v672 = vpack.c.b16 %v450, %v448
    %v673 = vpack.c.b16 %v451, %v449
    %v674 = vpack.c.b16 %v454, %v452
    %v675 = vpack.c.b16 %v455, %v453
    %v676 = vpack.c.b16 %v458, %v456
    %v677 = vpack.c.b16 %v459, %v457
    %v678 = vpack.c.b16 %v462, %v460
    %v679 = vpack.c.b16 %v463, %v461
    %v680 = vpack.c.b16 %v466, %v464
    %v681 = vpack.c.b16 %v467, %v465
    %v682 = vpack.c.b16 %v470, %v468
    %v683 = vpack.c.b16 %v471, %v469
    %v684 = vpack.c.b16 %v474, %v472
    %v685 = vpack.c.b16 %v475, %v473
    %v686 = vpack.c.b16 %v478, %v476
    %v687 = vpack.c.b16 %v479, %v477
    %v688 = vpack.c.b16 %v482, %v480
    %v689 = vpack.c.b16 %v483, %v481
    %v690 = vpack.c.b16 %v486, %v484
    %v691 = vpack.c.b16 %v487, %v485
    %v692 = vpack.c.b16 %v490, %v488
    %v693 = vpack.c.b16 %v491, %v489
    %v694 = vpack.c.b16 %v494, %v492
    %v695 = vpack.c.b16 %v495, %v493
    %v696 = vpack.c.b16 %v498, %v496
    %v697 = vpack.c.b16 %v499, %v497
    %v698 = vpack.c.b16 %v502, %v500
    %v699 = vpack.c.b16 %v503, %v501
    %v700 = vpack.c.b16 %v506, %v504
    %v701 = vpack.c.b16 %v507, %v505
    %v702 = vpack.c.b16 %v510, %v508
    %v703 = vpack.c.b16 %v511, %v509
    %v704 = vpack.c.b16 %v514, %v512
    %v705 = vpack.c.b16 %v515, %v513
    %v706 = vpack.c.b16 %v518, %v516
    %v707 = vpack.c.b16 %v519, %v517
    %v708 = vpack.c.b16 %v522, %v520
    %v709 = vpack.c.b16 %v523, %v521
    %v710 = vpack.c.b16 %v526, %v524
    %v711 = vpack.c.b16 %v527, %v525
    %v712 = vpack.c.b16 %v530, %v528
    %v713 = vpack.c.b16 %v531, %v529
    %v714 = vpack.c.b16 %v534, %v532
    %v715 = vpack.c.b16 %v535, %v533
    %v716 = vpack.c.b16 %v538, %v536
    %v717 = vpack.c.b16 %v539, %v537
    %v718 = vpack.c.b16 %v542, %v540
    %v719 = vpack.c.b16 %v543, %v541
    %v720 = vpack.c.b16 %v546, %v544
    %v721 = vpack.c.b16 %v547, %v545
    %v722 = vpack.c.b16 %v550, %v548
    %v723 = vpack.c.b16 %v551, %v549
    %v724 = vpack.c.b16 %v554, %v552
    %v725 = vpack.c.b16 %v555, %v553
    %v726 = vpack.c.b16 %v558, %v556
    %v727 = vpack.c.b16 %v559, %v557
    %v728 = vpack.c.b16 %v562, %v560
    %v729 = vpack.c.b16 %v563, %v561
    %v730 = vpack.c.b16 %v566, %v564
    %v731 = vpack.c.b16 %v567, %v565
    %v732 = vpack.c.b16 %v570, %v568
    %v733 = vpack.c.b16 %v571, %v569
    %v734 = vpack.c.b16 %v574, %v572
    %v735 = vpack.c.b16 %v575, %v573
    %v736 = vpack.c.b16 %v578, %v576
    %v737 = vpack.c.b16 %v579, %v577
    %v738 = vpack.c.b16 %v582, %v580
    %v739 = vpack.c.b16 %v583, %v581
    %v740 = vpack.c.b16 %v586, %v584
    %v741 = vpack.c.b16 %v587, %v585
    %v742 = vpack.c.b16 %v590, %v588
    %v743 = vpack.c.b16 %v591, %v589
    %v744 = vpack.c.b16 %v594, %v592
    %v745 = vpack.c.b16 %v595, %v593
    %v746 = vpack.c.b16 %v598, %v596
    %v747 = vpack.c.b16 %v599, %v597
    %v748 = vpack.c.b16 %v602, %v600
    %v749 = vpack.c.b16 %v603, %v601
    %v750 = vpack.c.b16 %v606, %v604
    %v751 = vpack.c.b16 %v607, %v605
    %v752 = vpack.c.b16 %v610, %v608
    %v753 = vpack.c.b16 %v611, %v609
    %v754 = vpack.c.b16 %v614, %v612
    %v755 = vpack.c.b16 %v615, %v613
    %v756 = vpack.c.b16 %v618, %v616
    %v757 = vpack.c.b16 %v619, %v617
    %v758 = vpack.c.b16 %v622, %v620
    %v759 = vpack.c.b16 %v623, %v621
    %v760 = vpack.c.b16 %v626, %v624
    %v761 = vpack.c.b16 %v627, %v625
    %v762 = vpack.c.b16 %v630, %v628
    %v763 = vpack.c.b16 %v631, %v629
    %v764 = vpack.c.b16 %v634, %v632
    %v765 = vpack.c.b16 %v635, %v633
    %v766 = vpack.c.b16 %v638, %v636
    %v767 = vpack.c.b16 %v639, %v637
    %896 = vmatpush.bf16.msra.mxu0 %v654
    %897 = vmatpush.bf16.msra.mxu0 %v652
    %898 = vmatpush.bf16.msra.mxu0 %v650
    %899 = vmatpush.bf16.msra.mxu0 %v648
    %900 = vmatpush.bf16.msra.mxu0 %v646
    %901 = vmatpush.bf16.msra.mxu0 %v644
    %902 = vmatpush.bf16.msra.mxu0 %v642
    %903 = vmatpush.bf16.msra.mxu0 %v640
    %904 = vmatmul.bf16.gmra.mxu0 %v119
    %v905 = vpop.f32.mrf.mxu0
    %v906 = vadd.f32 0.0, %v905
    %v907 = vpop.f32.mrf.mxu0
    %v908 = vadd.f32 0.0, %v907
    %909 = vdwg.mxu0
    %910 = vmatpush.bf16.msra.mxu0 %v670
    %911 = vmatpush.bf16.msra.mxu0 %v668
    %912 = vmatpush.bf16.msra.mxu0 %v666
    %913 = vmatpush.bf16.msra.mxu0 %v664
    %914 = vmatpush.bf16.msra.mxu0 %v662
    %915 = vmatpush.bf16.msra.mxu0 %v660
    %916 = vmatpush.bf16.msra.mxu0 %v658
    %917 = vmatpush.bf16.msra.mxu0 %v656
    %918 = vmatmul.bf16.gmra.mxu0 %v120
    %v919 = vpop.f32.mrf.mxu0
    %v920 = vadd.f32 %v906, %v919
    %v921 = vpop.f32.mrf.mxu0
    %v922 = vadd.f32 %v908, %v921
    %923 = vdwg.mxu0
    %924 = vmatpush.bf16.msra.mxu0 %v686
    %925 = vmatpush.bf16.msra.mxu0 %v684
    %926 = vmatpush.bf16.msra.mxu0 %v682
    %927 = vmatpush.bf16.msra.mxu0 %v680
    %928 = vmatpush.bf16.msra.mxu0 %v678
    %929 = vmatpush.bf16.msra.mxu0 %v676
    %930 = vmatpush.bf16.msra.mxu0 %v674
    %931 = vmatpush.bf16.msra.mxu0 %v672
    %932 = vmatmul.bf16.gmra.mxu0 %v121
    %v933 = vpop.f32.mrf.mxu0
    %v934 = vadd.f32 %v920, %v933
    %v935 = vpop.f32.mrf.mxu0
    %v936 = vadd.f32 %v922, %v935
    %937 = vdwg.mxu0
    %938 = vmatpush.bf16.msra.mxu0 %v702
    %939 = vmatpush.bf16.msra.mxu0 %v700
    %940 = vmatpush.bf16.msra.mxu0 %v698
    %941 = vmatpush.bf16.msra.mxu0 %v696
    %942 = vmatpush.bf16.msra.mxu0 %v694
    %943 = vmatpush.bf16.msra.mxu0 %v692
    %944 = vmatpush.bf16.msra.mxu0 %v690
    %945 = vmatpush.bf16.msra.mxu0 %v688
    %946 = vmatmul.bf16.gmra.mxu0 %v122
    %v947 = vpop.f32.mrf.mxu0
    %v948 = vadd.f32 %v934, %v947
    %v949 = vpop.f32.mrf.mxu0
    %v950 = vadd.f32 %v936, %v949
    %951 = vdwg.mxu0
    %952 = vmatpush.bf16.msra.mxu0 %v718
    %953 = vmatpush.bf16.msra.mxu0 %v716
    %954 = vmatpush.bf16.msra.mxu0 %v714
    %955 = vmatpush.bf16.msra.mxu0 %v712
    %956 = vmatpush.bf16.msra.mxu0 %v710
    %957 = vmatpush.bf16.msra.mxu0 %v708
    %958 = vmatpush.bf16.msra.mxu0 %v706
    %959 = vmatpush.bf16.msra.mxu0 %v704
    %960 = vmatmul.bf16.gmra.mxu0 %v123
    %v961 = vpop.f32.mrf.mxu0
    %v962 = vadd.f32 %v948, %v961
    %v963 = vpop.f32.mrf.mxu0
    %v964 = vadd.f32 %v950, %v963
    %965 = vdwg.mxu0
    %966 = vmatpush.bf16.msra.mxu0 %v734
    %967 = vmatpush.bf16.msra.mxu0 %v732
    %968 = vmatpush.bf16.msra.mxu0 %v730
    %969 = vmatpush.bf16.msra.mxu0 %v728
    %970 = vmatpush.bf16.msra.mxu0 %v726
    %971 = vmatpush.bf16.msra.mxu0 %v724
    %972 = vmatpush.bf16.msra.mxu0 %v722
    %973 = vmatpush.bf16.msra.mxu0 %v720
    %974 = vmatmul.bf16.gmra.mxu0 %v124
    %v975 = vpop.f32.mrf.mxu0
    %v976 = vadd.f32 %v962, %v975
    %v977 = vpop.f32.mrf.mxu0
    %v978 = vadd.f32 %v964, %v977
    %979 = vdwg.mxu0
    %980 = vmatpush.bf16.msra.mxu0 %v750
    %981 = vmatpush.bf16.msra.mxu0 %v748
    %982 = vmatpush.bf16.msra.mxu0 %v746
    %983 = vmatpush.bf16.msra.mxu0 %v744
    %984 = vmatpush.bf16.msra.mxu0 %v742
    %985 = vmatpush.bf16.msra.mxu0 %v740
    %986 = vmatpush.bf16.msra.mxu0 %v738
    %987 = vmatpush.bf16.msra.mxu0 %v736
    %988 = vmatmul.bf16.gmra.mxu0 %v125
    %v989 = vpop.f32.mrf.mxu0
    %v990 = vadd.f32 %v976, %v989
    %v991 = vpop.f32.mrf.mxu0
    %v992 = vadd.f32 %v978, %v991
    %993 = vdwg.mxu0
    %994 = vmatpush.bf16.msra.mxu0 %v766
    %995 = vmatpush.bf16.msra.mxu0 %v764
    %996 = vmatpush.bf16.msra.mxu0 %v762
    %997 = vmatpush.bf16.msra.mxu0 %v760
    %998 = vmatpush.bf16.msra.mxu0 %v758
    %999 = vmatpush.bf16.msra.mxu0 %v756
    %1000 = vmatpush.bf16.msra.mxu0 %v754
    %1001 = vmatpush.bf16.msra.mxu0 %v752
    %1002 = vmatmul.bf16.gmra.mxu0 %v126
    %v1003 = vpop.f32.mrf.mxu0
    %v1004 = vadd.f32 %v990, %v1003
    %v1005 = vpop.f32.mrf.mxu0
    %v1006 = vadd.f32 %v992, %v1005
    %1007 = vdwg.mxu0
    %1008 = vmatpush.bf16.msra.mxu0 %v655
    %1009 = vmatpush.bf16.msra.mxu0 %v653
    %1010 = vmatpush.bf16.msra.mxu0 %v651
    %1011 = vmatpush.bf16.msra.mxu0 %v649
    %1012 = vmatpush.bf16.msra.mxu0 %v647
    %1013 = vmatpush.bf16.msra.mxu0 %v645
    %1014 = vmatpush.bf16.msra.mxu0 %v643
    %1015 = vmatpush.bf16.msra.mxu0 %v641
    %1016 = vmatmul.bf16.gmra.mxu0 %v119
    %v1017 = vpop.f32.mrf.mxu0
    %v1018 = vadd.f32 0.0, %v1017
    %v1019 = vpop.f32.mrf.mxu0
    %v1020 = vadd.f32 0.0, %v1019
    %1021 = vdwg.mxu0
    %1022 = vmatpush.bf16.msra.mxu0 %v671
    %1023 = vmatpush.bf16.msra.mxu0 %v669
    %1024 = vmatpush.bf16.msra.mxu0 %v667
    %1025 = vmatpush.bf16.msra.mxu0 %v665
    %1026 = vmatpush.bf16.msra.mxu0 %v663
    %1027 = vmatpush.bf16.msra.mxu0 %v661
    %1028 = vmatpush.bf16.msra.mxu0 %v659
    %1029 = vmatpush.bf16.msra.mxu0 %v657
    %1030 = vmatmul.bf16.gmra.mxu0 %v120
    %v1031 = vpop.f32.mrf.mxu0
    %v1032 = vadd.f32 %v1018, %v1031
    %v1033 = vpop.f32.mrf.mxu0
    %v1034 = vadd.f32 %v1020, %v1033
    %1035 = vdwg.mxu0
    %1036 = vmatpush.bf16.msra.mxu0 %v687
    %1037 = vmatpush.bf16.msra.mxu0 %v685
    %1038 = vmatpush.bf16.msra.mxu0 %v683
    %1039 = vmatpush.bf16.msra.mxu0 %v681
    %1040 = vmatpush.bf16.msra.mxu0 %v679
    %1041 = vmatpush.bf16.msra.mxu0 %v677
    %1042 = vmatpush.bf16.msra.mxu0 %v675
    %1043 = vmatpush.bf16.msra.mxu0 %v673
    %1044 = vmatmul.bf16.gmra.mxu0 %v121
    %v1045 = vpop.f32.mrf.mxu0
    %v1046 = vadd.f32 %v1032, %v1045
    %v1047 = vpop.f32.mrf.mxu0
    %v1048 = vadd.f32 %v1034, %v1047
    %1049 = vdwg.mxu0
    %1050 = vmatpush.bf16.msra.mxu0 %v703
    %1051 = vmatpush.bf16.msra.mxu0 %v701
    %1052 = vmatpush.bf16.msra.mxu0 %v699
    %1053 = vmatpush.bf16.msra.mxu0 %v697
    %1054 = vmatpush.bf16.msra.mxu0 %v695
    %1055 = vmatpush.bf16.msra.mxu0 %v693
    %1056 = vmatpush.bf16.msra.mxu0 %v691
    %1057 = vmatpush.bf16.msra.mxu0 %v689
    %1058 = vmatmul.bf16.gmra.mxu0 %v122
    %v1059 = vpop.f32.mrf.mxu0
    %v1060 = vadd.f32 %v1046, %v1059
    %v1061 = vpop.f32.mrf.mxu0
    %v1062 = vadd.f32 %v1048, %v1061
    %1063 = vdwg.mxu0
    %1064 = vmatpush.bf16.msra.mxu0 %v719
    %1065 = vmatpush.bf16.msra.mxu0 %v717
    %1066 = vmatpush.bf16.msra.mxu0 %v715
    %1067 = vmatpush.bf16.msra.mxu0 %v713
    %1068 = vmatpush.bf16.msra.mxu0 %v711
    %1069 = vmatpush.bf16.msra.mxu0 %v709
    %1070 = vmatpush.bf16.msra.mxu0 %v707
    %1071 = vmatpush.bf16.msra.mxu0 %v705
    %1072 = vmatmul.bf16.gmra.mxu0 %v123
    %v1073 = vpop.f32.mrf.mxu0
    %v1074 = vadd.f32 %v1060, %v1073
    %v1075 = vpop.f32.mrf.mxu0
    %v1076 = vadd.f32 %v1062, %v1075
    %1077 = vdwg.mxu0
    %1078 = vmatpush.bf16.msra.mxu0 %v735
    %1079 = vmatpush.bf16.msra.mxu0 %v733
    %1080 = vmatpush.bf16.msra.mxu0 %v731
    %1081 = vmatpush.bf16.msra.mxu0 %v729
    %1082 = vmatpush.bf16.msra.mxu0 %v727
    %1083 = vmatpush.bf16.msra.mxu0 %v725
    %1084 = vmatpush.bf16.msra.mxu0 %v723
    %1085 = vmatpush.bf16.msra.mxu0 %v721
    %1086 = vmatmul.bf16.gmra.mxu0 %v124
    %v1087 = vpop.f32.mrf.mxu0
    %v1088 = vadd.f32 %v1074, %v1087
    %v1089 = vpop.f32.mrf.mxu0
    %v1090 = vadd.f32 %v1076, %v1089
    %1091 = vdwg.mxu0
    %1092 = vmatpush.bf16.msra.mxu0 %v751
    %1093 = vmatpush.bf16.msra.mxu0 %v749
    %1094 = vmatpush.bf16.msra.mxu0 %v747
    %1095 = vmatpush.bf16.msra.mxu0 %v745
    %1096 = vmatpush.bf16.msra.mxu0 %v743
    %1097 = vmatpush.bf16.msra.mxu0 %v741
    %1098 = vmatpush.bf16.msra.mxu0 %v739
    %1099 = vmatpush.bf16.msra.mxu0 %v737
    %1100 = vmatmul.bf16.gmra.mxu0 %v125
    %v1101 = vpop.f32.mrf.mxu0
    %v1102 = vadd.f32 %v1088, %v1101
    %v1103 = vpop.f32.mrf.mxu0
    %v1104 = vadd.f32 %v1090, %v1103
    %1105 = vdwg.mxu0
    %1106 = vmatpush.bf16.msra.mxu0 %v767
    %1107 = vmatpush.bf16.msra.mxu0 %v765
    %1108 = vmatpush.bf16.msra.mxu0 %v763
    %1109 = vmatpush.bf16.msra.mxu0 %v761
    %1110 = vmatpush.bf16.msra.mxu0 %v759
    %1111 = vmatpush.bf16.msra.mxu0 %v757
    %1112 = vmatpush.bf16.msra.mxu0 %v755
    %1113 = vmatpush.bf16.msra.mxu0 %v753
    %1114 = vmatmul.bf16.gmra.mxu0 %v126
    %v1115 = vpop.f32.mrf.mxu0
    %v1116 = vadd.f32 %v1102, %v1115
    %v1117 = vpop.f32.mrf.mxu0
    %v1118 = vadd.f32 %v1104, %v1117
    %1119 = vdwg.mxu0
    %v1120 = vpack.c.bf16 %v1116, %v1004
    %v1121 = vpack.c.bf16 %v1118, %v1006
    %v1123 = vperm.slane %v255, 0
    %v1124 = vperm.slane %v255, 1
    %v1127 = vpack.c.bf16 %v1124, %v1123
    %v1129 = vunpack.c.l.b16 %v1127
    %v1130 = vunpack.c.h.b16 %v1127
    %v1131 = vpack.c.b16 %v1129, %v1129
    %v1132 = vpack.c.b16 %v1130, %v1130
    %v1134 = vpack.i.b16 %v1131, %v1131
    %v1136 = vperm.slane %v1134, 0
    %v1138 = vpack.i.b16 %v1132, %v1132
    %v1140 = vperm.slane %v1138, 0
    %v1141 = vunpack.c.l.bf16 %v1120
    %v1142 = vunpack.c.h.bf16 %v1120
    %v1143 = vunpack.c.l.bf16 %v1121
    %v1144 = vunpack.c.h.bf16 %v1121
    %v1145 = vunpack.c.l.bf16 %v1136
    %v1146 = vunpack.c.l.bf16 %v1140
    %v1147 = vadd.f32 %v1141, %v1145
    %v1148 = vadd.f32 %v1142, %v1146
    %v1149 = vadd.f32 %v1143, %v1145
    %v1150 = vadd.f32 %v1144, %v1146
    %v1151 = vpack.c.bf16 %v1148, %v1147
    %v1152 = vpack.c.bf16 %v1150, %v1149
    %v1153 = vunpack.c.l.bf16 %v1151
    %v1154 = vunpack.c.h.bf16 %v1151
    %v1155 = vunpack.c.l.bf16 %v1152
    %v1156 = vunpack.c.h.bf16 %v1152
    %v1157 = vmax.f32 %v1153, 0.0
    %v1158 = vmax.f32 %v1154, 0.0
    %v1159 = vmax.f32 %v1155, 0.0
    %v1160 = vmax.f32 %v1156, 0.0
    %v1161 = vpack.c.bf16 %v1159, %v1157
    %v1162 = vpack.c.bf16 %v1160, %v1158
    %v1163 = vld [vmem:[#allocation8] sm:$0xf]
    %v1164 = vld [vmem:[#allocation8 + $0x4] sm:$0xf]
    %v1165 = vld [vmem:[#allocation8 + $0x8] sm:$0xf]
    %v1166 = vld [vmem:[#allocation8 + $0xc] sm:$0xf]
    %v1167 = vld [vmem:[#allocation8 + $0x10] sm:$0xf]
    %v1168 = vld [vmem:[#allocation8 + $0x14] sm:$0xf]
    %v1169 = vld [vmem:[#allocation8 + $0x18] sm:$0xf]
    %v1170 = vld [vmem:[#allocation8 + $0x1c] sm:$0xf]
    %v1171 = vld [vmem:[#allocation8 + $0x20] sm:$0xf]
    %v1172 = vld [vmem:[#allocation8 + $0x24] sm:$0xf]
    %v1173 = vld [vmem:[#allocation8 + $0x28] sm:$0xf]
    %v1174 = vld [vmem:[#allocation8 + $0x2c] sm:$0xf]
    %v1175 = vld [vmem:[#allocation8 + $0x30] sm:$0xf]
    %v1176 = vld [vmem:[#allocation8 + $0x34] sm:$0xf]
    %v1177 = vld [vmem:[#allocation8 + $0x38] sm:$0xf]
    %v1178 = vld [vmem:[#allocation8 + $0x3c] sm:$0xf]
    %v1179 = vld [vmem:[#allocation8 + $0x40] sm:$0xf]
    %v1180 = vld [vmem:[#allocation8 + $0x44] sm:$0xf]
    %v1181 = vld [vmem:[#allocation8 + $0x48] sm:$0xf]
    %v1182 = vld [vmem:[#allocation8 + $0x4c] sm:$0xf]
    %v1183 = vld [vmem:[#allocation8 + $0x50] sm:$0xf]
    %v1184 = vld [vmem:[#allocation8 + $0x54] sm:$0xf]
    %v1185 = vld [vmem:[#allocation8 + $0x58] sm:$0xf]
    %v1186 = vld [vmem:[#allocation8 + $0x5c] sm:$0xf]
    %v1187 = vld [vmem:[#allocation8 + $0x60] sm:$0xf]
    %v1188 = vld [vmem:[#allocation8 + $0x64] sm:$0xf]
    %v1189 = vld [vmem:[#allocation8 + $0x68] sm:$0xf]
    %v1190 = vld [vmem:[#allocation8 + $0x6c] sm:$0xf]
    %v1191 = vld [vmem:[#allocation8 + $0x70] sm:$0xf]
    %v1192 = vld [vmem:[#allocation8 + $0x74] sm:$0xf]
    %v1193 = vld [vmem:[#allocation8 + $0x78] sm:$0xf]
    %v1194 = vld [vmem:[#allocation8 + $0x7c] sm:$0xf]
    %v1195 = vld [vmem:[%s4] sm:$0x1]
    %v1228 = vunpack.c.l.b16 %v1163
    %v1229 = vunpack.c.l.b16 %v1164
    %v1230 = vunpack.c.l.b16 %v1165
    %v1231 = vunpack.c.l.b16 %v1166
    %v1232 = vunpack.c.l.b16 %v1167
    %v1233 = vunpack.c.l.b16 %v1168
    %v1234 = vunpack.c.l.b16 %v1169
    %v1235 = vunpack.c.l.b16 %v1170
    %v1236 = vunpack.c.l.b16 %v1171
    %v1237 = vunpack.c.l.b16 %v1172
    %v1238 = vunpack.c.l.b16 %v1173
    %v1239 = vunpack.c.l.b16 %v1174
    %v1240 = vunpack.c.l.b16 %v1175
    %v1241 = vunpack.c.l.b16 %v1176
    %v1242 = vunpack.c.l.b16 %v1177
    %v1243 = vunpack.c.l.b16 %v1178
    %v1244 = vunpack.c.l.b16 %v1179
    %v1245 = vunpack.c.l.b16 %v1180
    %v1246 = vunpack.c.l.b16 %v1181
    %v1247 = vunpack.c.l.b16 %v1182
    %v1248 = vunpack.c.l.b16 %v1183
    %v1249 = vunpack.c.l.b16 %v1184
    %v1250 = vunpack.c.l.b16 %v1185
    %v1251 = vunpack.c.l.b16 %v1186
    %v1252 = vunpack.c.l.b16 %v1187
    %v1253 = vunpack.c.l.b16 %v1188
    %v1254 = vunpack.c.l.b16 %v1189
    %v1255 = vunpack.c.l.b16 %v1190
    %v1256 = vunpack.c.l.b16 %v1191
    %v1257 = vunpack.c.l.b16 %v1192
    %v1258 = vunpack.c.l.b16 %v1193
    %v1259 = vunpack.c.l.b16 %v1194
    %v1260 = vpack.c.b16 %v1229, %v1228
    %v1261 = vpack.c.b16 %v1231, %v1230
    %v1262 = vpack.c.b16 %v1233, %v1232
    %v1263 = vpack.c.b16 %v1235, %v1234
    %v1264 = vpack.c.b16 %v1237, %v1236
    %v1265 = vpack.c.b16 %v1239, %v1238
    %v1266 = vpack.c.b16 %v1241, %v1240
    %v1267 = vpack.c.b16 %v1243, %v1242
    %v1268 = vpack.c.b16 %v1245, %v1244
    %v1269 = vpack.c.b16 %v1247, %v1246
    %v1270 = vpack.c.b16 %v1249, %v1248
    %v1271 = vpack.c.b16 %v1251, %v1250
    %v1272 = vpack.c.b16 %v1253, %v1252
    %v1273 = vpack.c.b16 %v1255, %v1254
    %v1274 = vpack.c.b16 %v1257, %v1256
    %v1275 = vpack.c.b16 %v1259, %v1258
    %1292 = vmatpush.bf16.msra.mxu0 %v1267
    %1293 = vmatpush.bf16.msra.mxu0 %v1266
    %1294 = vmatpush.bf16.msra.mxu0 %v1265
    %1295 = vmatpush.bf16.msra.mxu0 %v1264
    %1296 = vmatpush.bf16.msra.mxu0 %v1263
    %1297 = vmatpush.bf16.msra.mxu0 %v1262
    %1298 = vmatpush.bf16.msra.mxu0 %v1261
    %1299 = vmatpush.bf16.msra.mxu0 %v1260
    %1300 = vmatmul.bf16.gmra.mxu0 %v1161
    %v1301 = vpop.f32.mrf.mxu0
    %v1302 = vadd.f32 0.0, %v1301
    %v1303 = vpop.f32.mrf.mxu0
    %v1304 = vadd.f32 0.0, %v1303
    %1305 = vdwg.mxu0
    %1306 = vmatpush.bf16.msra.mxu0 %v1275
    %1307 = vmatpush.bf16.msra.mxu0 %v1274
    %1308 = vmatpush.bf16.msra.mxu0 %v1273
    %1309 = vmatpush.bf16.msra.mxu0 %v1272
    %1310 = vmatpush.bf16.msra.mxu0 %v1271
    %1311 = vmatpush.bf16.msra.mxu0 %v1270
    %1312 = vmatpush.bf16.msra.mxu0 %v1269
    %1313 = vmatpush.bf16.msra.mxu0 %v1268
    %1314 = vmatmul.bf16.gmra.mxu0 %v1162
    %v1315 = vpop.f32.mrf.mxu0
    %v1316 = vadd.f32 %v1302, %v1315
    %v1317 = vpop.f32.mrf.mxu0
    %v1318 = vadd.f32 %v1304, %v1317
    %1319 = vdwg.mxu0
    %v1320 = vpack.c.bf16 %v1316, %v1316
    %v1321 = vpack.c.bf16 %v1318, %v1318
    %v1322 = vpack.c.bf16 %v1195, %v1195
    %v1324 = vpack.i.b16 %v1322, %v1322
    %v1326 = vperm.slane %v1324, 0
    %v1327 = vunpack.c.l.bf16 %v1320
    %v1328 = vunpack.c.l.bf16 %v1321
    %v1329 = vunpack.c.l.bf16 %v1326
    %v1330 = vadd.f32 %v1327, %v1329
    %v1331 = vadd.f32 %v1328, %v1329
    %v1332 = vpack.c.bf16 %v1330, %v1330
    %v1333 = vpack.c.bf16 %v1331, %v1331
    %v1334 = vunpack.c.l.bf16 %v1332
    %v1335 = vunpack.c.l.bf16 %v1333
    %v1336 = vmax.f32 %v1334, 0.0
    %v1337 = vmax.f32 %v1335, 0.0
    %v1338 = vpack.c.bf16 %v1337, %v1336
    %v1339 = vld [vmem:[#allocation10] sm:$0xf]
    %v1340 = vld [vmem:[#allocation10 + $0x4] sm:$0xf]
    %v1341 = vld [vmem:[#allocation10 + $0x8] sm:$0xf]
    %v1342 = vld [vmem:[#allocation10 + $0xc] sm:$0xf]
    %v1343 = vld [vmem:[#allocation10 + $0x10] sm:$0xf]
    %v1344 = vld [vmem:[#allocation10 + $0x14] sm:$0xf]
    %v1345 = vld [vmem:[#allocation10 + $0x18] sm:$0xf]
    %v1346 = vld [vmem:[#allocation10 + $0x1c] sm:$0xf]
    %v1347 = vld [vmem:[#allocation10 + $0x20] sm:$0xf]
    %v1348 = vld [vmem:[#allocation10 + $0x24] sm:$0xf]
    %v1349 = vld [vmem:[#allocation10 + $0x28] sm:$0xf]
    %v1350 = vld [vmem:[#allocation10 + $0x2c] sm:$0xf]
    %v1351 = vld [vmem:[#allocation10 + $0x30] sm:$0xf]
    %v1352 = vld [vmem:[#allocation10 + $0x34] sm:$0xf]
    %v1353 = vld [vmem:[#allocation10 + $0x38] sm:$0xf]
    %v1354 = vld [vmem:[#allocation10 + $0x3c] sm:$0xf]
    %v1355 = vld [vmem:[%s6] sm:$0x1]
    %v1357 = vperm.slane %v1355, 0
    %v1375 = vunpack.c.l.b16 %v1339
    %v1376 = vunpack.c.l.b16 %v1340
    %v1377 = vunpack.c.l.b16 %v1341
    %v1378 = vunpack.c.l.b16 %v1342
    %v1379 = vunpack.c.l.b16 %v1343
    %v1380 = vunpack.c.l.b16 %v1344
    %v1381 = vunpack.c.l.b16 %v1345
    %v1382 = vunpack.c.l.b16 %v1346
    %v1383 = vunpack.c.l.b16 %v1347
    %v1384 = vunpack.c.l.b16 %v1348
    %v1385 = vunpack.c.l.b16 %v1349
    %v1386 = vunpack.c.l.b16 %v1350
    %v1387 = vunpack.c.l.b16 %v1351
    %v1388 = vunpack.c.l.b16 %v1352
    %v1389 = vunpack.c.l.b16 %v1353
    %v1390 = vunpack.c.l.b16 %v1354
    %v1391 = vpack.c.b16 %v1376, %v1375
    %v1392 = vpack.c.b16 %v1378, %v1377
    %v1393 = vpack.c.b16 %v1380, %v1379
    %v1394 = vpack.c.b16 %v1382, %v1381
    %v1395 = vpack.c.b16 %v1384, %v1383
    %v1396 = vpack.c.b16 %v1386, %v1385
    %v1397 = vpack.c.b16 %v1388, %v1387
    %v1398 = vpack.c.b16 %v1390, %v1389
    %1407 = vmatpush.bf16.msra.mxu0 %v1398
    %1408 = vmatpush.bf16.msra.mxu0 %v1397
    %1409 = vmatpush.bf16.msra.mxu0 %v1396
    %1410 = vmatpush.bf16.msra.mxu0 %v1395
    %1411 = vmatpush.bf16.msra.mxu0 %v1394
    %1412 = vmatpush.bf16.msra.mxu0 %v1393
    %1413 = vmatpush.bf16.msra.mxu0 %v1392
    %1414 = vmatpush.bf16.msra.mxu0 %v1391
    %1415 = vmatmul.bf16.gmra.mxu0 %v1338
    %v1416 = vpop.f32.mrf.mxu0
    %v1417 = vadd.f32 %v1357, %v1416
    %v1418 = vpop.f32.mrf.mxu0
    %v1419 = vadd.f32 %v1357, %v1418
    %1420 = vdwg.mxu0
    %1421 = vst [vmem:[#allocation11] sm:$0xff] %v1417
    %1422 = vst [vmem:[#allocation11 + $0x8] sm:$0xff] %v1419
    // Predicated region
    $region50: #{tpu_custom_call.1} parent=1 // pred_check
      _
    $region51: #{tpu_custom_call.1} parent=1 // pred_check_branch
      %1424 = sbr.rel (0) target = $region53
    $region52: #{tpu_custom_call.1} parent=1 // pred_region
      %1426 = vsyncadd [#allocation4], 0
      %s1427 = sshll.u32 [#allocation11], 4
      %s1428 = int_to_ptr.vmem [resolvable:$true] %s1427
      %s1429 = sshll.u32 %s7, 4
      %s1430 = int_to_ptr.hbm [resolvable:$true] %s1429
      %1435 = dma.vmem_to_hbm [thread:$0]  %s1428, 256, %s1430, [#allocation4], 128, 128, 8
    $region53: #{tpu_custom_call.1} parent=1 // pred_fallthru
      _
    // Predicated region
    $region54: #{tpu_custom_call.1} parent=1 // pred_check
      _
    $region55: #{tpu_custom_call.1} parent=1 // pred_check_branch
      %1437 = sbr.rel (0) target = $region57
    $region56: #{tpu_custom_call.1} parent=1 // pred_region
      %1439 = dma.done [#allocation4], 256
    $region57: #{tpu_custom_call.1} parent=1 // pred_fallthru
      _
    %1440 = vsyncpa [#allocation3], 1
    %1441 = vsyncpa [#allocation6], 1
    %1442 = vsyncpa [#allocation9], 1
    %1443 = vsyncpa [#allocation4], 1

// kernel: tpu_custom_call.1
$region0: #{tpu_custom_call.1}
  #allocation0 [shape = 'u32[]', space=smem, size = 0x4, offset = 0x4, fixed_abs, tag = 'smem constant byte address 0x4 - core index']
  #allocation1 [shape = 'u32[72,128]{1,0:T(1,128)}', space=vmem, size = 0x9000, scoped, tag = 'internal scratch']
  %s0 = inlined_call_operand.hbm [shape: f32[16,1024], index: 0, kind: input, shape index: {}]
  %s1 = inlined_call_operand.hbm [shape: bf16[1024,256], index: 1, kind: input, shape index: {}]
  %s2 = inlined_call_operand.hbm [shape: f32[1,256], index: 2, kind: input, shape index: {}]
  %s3 = inlined_call_operand.hbm [shape: bf16[256,128], index: 3, kind: input, shape index: {}]
  %s4 = inlined_call_operand.vmem [shape: f32[1,128], index: 4, kind: input, shape index: {}]
  %s5 = inlined_call_operand.hbm [shape: bf16[128,128], index: 5, kind: input, shape index: {}]
  %s6 = inlined_call_operand.vmem [shape: f32[1,128], index: 6, kind: input, shape index: {}]
  %s7 = inlined_call_operand.hbm [shape: f32[16,128], index: 7, kind: output, shape index: {}]
  %s8 = sld [smem:[#allocation0]]
  $region58: #{tpu_custom_call.1} parent=0
    _
  %s10 = ssub.s32 1, %s8
  %s11 = scalar_select 0, %s10, %s8
  $region1: #{tpu_custom_call.1} parent=0
    #allocation2 [shape = 'u8[65536]{0}', space=vmem, size = 0x10000, scoped, tag = 'input window, operand 0, single buffered']
    #allocation3 [shape = 's32[1]{0}', space=sflag, size = 0x4, scoped, tag = 'scoped memory for tpu_custom_call.1']
    #allocation4 [shape = 's32[1]{0}', space=sflag, size = 0x4, scoped, tag = 'scoped memory for tpu_custom_call.1']
    #allocation5 [shape = 'u8[524288]{0}', space=vmem, size = 0x80000, scoped, tag = 'input window, operand 1, single buffered']
    #allocation6 [shape = 's32[1]{0}', space=sflag, size = 0x4, scoped, tag = 'scoped memory for tpu_custom_call.1']
    #allocation7 [shape = 'u8[1024]{0}', space=vmem, size = 0x400, scoped, tag = 'input window, operand 2, single buffered']
    #allocation8 [shape = 'u8[65536]{0}', space=vmem, size = 0x10000, scoped, tag = 'input window, operand 3, single buffered']
    #allocation9 [shape = 's32[1]{0}', space=sflag, size = 0x4, scoped, tag = 'scoped memory for tpu_custom_call.1']
    #allocation10 [shape = 'u8[32768]{0}', space=vmem, size = 0x8000, scoped, tag = 'input window, operand 5, single buffered']
    #allocation11 [shape = 'u8[8192]{0}', space=vmem, size = 0x2000, scoped, tag = 'output window, operand 0, single buffered']
    %12 = vsyncpa [#allocation3], 0
    %13 = vsyncpa [#allocation6], 0
    %14 = vsyncpa [#allocation9], 0
    %15 = vsyncpa [#allocation4], 0
    // Predicated region
    $region2: #{tpu_custom_call.1} parent=1 // pred_check
      _
    $region3: #{tpu_custom_call.1} parent=1 // pred_check_branch
      %17 = sbr.rel (0) target = $region5
    $region4: #{tpu_custom_call.1} parent=1 // pred_region
      %19 = vsyncadd [#allocation3], 0
      %s20 = sshll.u32 %s0, 4
      %s21 = int_to_ptr.hbm [resolvable:$true] %s20
      %s22 = sshll.u32 [#allocation2], 4
      %s23 = int_to_ptr.vmem [resolvable:$true] %s22
      %28 = dma.hbm_to_vmem [thread:$0]  %s21, 2048, %s23, [#allocation3], 1024, 1024, 64
    $region5: #{tpu_custom_call.1} parent=1 // pred_fallthru
      _
    // Predicated region
    $region6: #{tpu_custom_call.1} parent=1 // pred_check
      _
    $region7: #{tpu_custom_call.1} parent=1 // pred_check_branch
      %30 = sbr.rel (0) target = $region9
    $region8: #{tpu_custom_call.1} parent=1 // pred_region
      %32 = vsyncadd [#allocation6], 0
      %s33 = sshll.u32 %s1, 4
      %s34 = int_to_ptr.hbm [resolvable:$true] %s33
      %s35 = sshll.u32 [#allocation5], 4
      %s36 = int_to_ptr.vmem [resolvable:$true] %s35
      %41 = dma.hbm_to_vmem [thread:$0]  %s34, 16384, %s36, [#allocation6], 128, 128, 8
    $region9: #{tpu_custom_call.1} parent=1 // pred_fallthru
      _
    // Predicated region
    $region10: #{tpu_custom_call.1} parent=1 // pred_check
      _
    $region11: #{tpu_custom_call.1} parent=1 // pred_check_branch
      %43 = sbr.rel (0) target = $region13
    $region12: #{tpu_custom_call.1} parent=1 // pred_region
      %45 = vsyncadd [#allocation6], 0
      %s47 = sshll.u32 %s2, 4
      %s48 = int_to_ptr.hbm [resolvable:$true] %s47
      %s49 = sshll.u32 [#allocation7], 4
      %s50 = int_to_ptr.vmem [resolvable:$true] %s49
      %52 = dma.hbm_to_vmem [thread:$0]  %s48, 32, %s50, [#allocation6]
    $region13: #{tpu_custom_call.1} parent=1 // pred_fallthru
      _
    // Predicated region
    $region14: #{tpu_custom_call.1} parent=1 // pred_check
      _
    $region15: #{tpu_custom_call.1} parent=1 // pred_check_branch
      %54 = sbr.rel (0) target = $region17
    $region16: #{tpu_custom_call.1} parent=1 // pred_region
      %56 = vsyncadd [#allocation9], 0
      %s57 = sshll.u32 %s3, 4
      %s58 = int_to_ptr.hbm [resolvable:$true] %s57
      %s59 = sshll.u32 [#allocation8], 4
      %s60 = int_to_ptr.vmem [resolvable:$true] %s59
      %65 = dma.hbm_to_vmem [thread:$0]  %s58, 2048, %s60, [#allocation9], 64, 64, 4
    $region17: #{tpu_custom_call.1} parent=1 // pred_fallthru
      _
    // Predicated region
    $region18: #{tpu_custom_call.1} parent=1 // pred_check
      _
    $region19: #{tpu_custom_call.1} parent=1 // pred_check_branch
      %67 = sbr.rel (0) target = $region21
    $region20: #{tpu_custom_call.1} parent=1 // pred_region
      _
    $region21: #{tpu_custom_call.1} parent=1 // pred_fallthru
      _
    // Predicated region
    $region22: #{tpu_custom_call.1} parent=1 // pred_check
      _
    $region23: #{tpu_custom_call.1} parent=1 // pred_check_branch
      %69 = sbr.rel (0) target = $region25
    $region24: #{tpu_custom_call.1} parent=1 // pred_region
      %71 = vsyncadd [#allocation9], 0
      %s72 = sshll.u32 %s5, 4
      %s73 = int_to_ptr.hbm [resolvable:$true] %s72
      %s74 = sshll.u32 [#allocation10], 4
      %s75 = int_to_ptr.vmem [resolvable:$true] %s74
      %80 = dma.hbm_to_vmem [thread:$0]  %s73, 1024, %s75, [#allocation9], 64, 64, 4
    $region25: #{tpu_custom_call.1} parent=1 // pred_fallthru
      _
    // Predicated region
    $region26: #{tpu_custom_call.1} parent=1 // pred_check
      _
    $region27: #{tpu_custom_call.1} parent=1 // pred_check_branch
      %82 = sbr.rel (0) target = $region29
    $region28: #{tpu_custom_call.1} parent=1 // pred_region
      _
    $region29: #{tpu_custom_call.1} parent=1 // pred_fallthru
      _
    // Predicated region
    $region30: #{tpu_custom_call.1} parent=1 // pred_check
      _
    $region31: #{tpu_custom_call.1} parent=1 // pred_check_branch
      %84 = sbr.rel (0) target = $region33
    $region32: #{tpu_custom_call.1} parent=1 // pred_region
      %86 = dma.done [#allocation3], 2048
    $region33: #{tpu_custom_call.1} parent=1 // pred_fallthru
      _
    // Predicated region
    $region34: #{tpu_custom_call.1} parent=1 // pred_check
      _
    $region35: #{tpu_custom_call.1} parent=1 // pred_check_branch
      %88 = sbr.rel (0) target = $region37
    $region36: #{tpu_custom_call.1} parent=1 // pred_region
      %90 = dma.done [#allocation6], 16384
    $region37: #{tpu_custom_call.1} parent=1 // pred_fallthru
      _
    // Predicated region
    $region38: #{tpu_custom_call.1} parent=1 // pred_check
      _
    $region39: #{tpu_custom_call.1} parent=1 // pred_check_branch
      %92 = sbr.rel (0) target = $region41
    $region40: #{tpu_custom_call.1} parent=1 // pred_region
      %94 = dma.done [#allocation6], 32
    $region41: #{tpu_custom_call.1} parent=1 // pred_fallthru
      _
    // Predicated region
    $region42: #{tpu_custom_call.1} parent=1 // pred_check
      _
    $region43: #{tpu_custom_call.1} parent=1 // pred_check_branch
      %96 = sbr.rel (0) target = $region45
    $region44: #{tpu_custom_call.1} parent=1 // pred_region
      %98 = dma.done [#allocation9], 2048
    $region45: #{tpu_custom_call.1} parent=1 // pred_fallthru
      _
    // Predicated region
    $region46: #{tpu_custom_call.1} parent=1 // pred_check
      _
    $region47: #{tpu_custom_call.1} parent=1 // pred_check_branch
      %100 = sbr.rel (0) target = $region49
    $region48: #{tpu_custom_call.1} parent=1 // pred_region
      %102 = dma.done [#allocation9], 1024
    $region49: #{tpu_custom_call.1} parent=1 // pred_fallthru
      _
    %v103 = vld [vmem:[#allocation2] sm:$0xff]
    %v104 = vld [vmem:[#allocation2 + $0x8] sm:$0xff]
    %v105 = vld [vmem:[#allocation2 + $0x10] sm:$0xff]
    %v106 = vld [vmem:[#allocation2 + $0x18] sm:$0xff]
    %v107 = vld [vmem:[#allocation2 + $0x20] sm:$0xff]
    %v108 = vld [vmem:[#allocation2 + $0x28] sm:$0xff]
    %v109 = vld [vmem:[#allocation2 + $0x30] sm:$0xff]
    %v110 = vld [vmem:[#allocation2 + $0x38] sm:$0xff]
    %v111 = vld [vmem:[#allocation2 + $0x40] sm:$0xff]
    %v112 = vld [vmem:[#allocation2 + $0x48] sm:$0xff]
    %v113 = vld [vmem:[#allocation2 + $0x50] sm:$0xff]
    %v114 = vld [vmem:[#allocation2 + $0x58] sm:$0xff]
    %v115 = vld [vmem:[#allocation2 + $0x60] sm:$0xff]
    %v116 = vld [vmem:[#allocation2 + $0x68] sm:$0xff]
    %v117 = vld [vmem:[#allocation2 + $0x70] sm:$0xff]
    %v118 = vld [vmem:[#allocation2 + $0x78] sm:$0xff]
    %v119 = vpack.c.bf16 %v111, %v103
    %v120 = vpack.c.bf16 %v112, %v104
    %v121 = vpack.c.bf16 %v113, %v105
    %v122 = vpack.c.bf16 %v114, %v106
    %v123 = vpack.c.bf16 %v115, %v107
    %v124 = vpack.c.bf16 %v116, %v108
    %v125 = vpack.c.bf16 %v117, %v109
    %v126 = vpack.c.bf16 %v118, %v110
    %v127 = vld [vmem:[#allocation5] sm:$0xff]
    %v128 = vld [vmem:[#allocation5 + $0x8] sm:$0xff]
    %v129 = vld [vmem:[#allocation5 + $0x10] sm:$0xff]
    %v130 = vld [vmem:[#allocation5 + $0x18] sm:$0xff]
    %v131 = vld [vmem:[#allocation5 + $0x20] sm:$0xff]
    %v132 = vld [vmem:[#allocation5 + $0x28] sm:$0xff]
    %v133 = vld [vmem:[#allocation5 + $0x30] sm:$0xff]
    %v134 = vld [vmem:[#allocation5 + $0x38] sm:$0xff]
    %v135 = vld [vmem:[#allocation5 + $0x40] sm:$0xff]
    %v136 = vld [vmem:[#allocation5 + $0x48] sm:$0xff]
    %v137 = vld [vmem:[#allocation5 + $0x50] sm:$0xff]
    %v138 = vld [vmem:[#allocation5 + $0x58] sm:$0xff]
    %v139 = vld [vmem:[#allocation5 + $0x60] sm:$0xff]
    %v140 = vld [vmem:[#allocation5 + $0x68] sm:$0xff]
    %v141 = vld [vmem:[#allocation5 + $0x70] sm:$0xff]
    %v142 = vld [vmem:[#allocation5 + $0x78] sm:$0xff]
    %v143 = vld [vmem:[#allocation5 + $0x80] sm:$0xff]
    %v144 = vld [vmem:[#allocation5 + $0x88] sm:$0xff]
    %v145 = vld [vmem:[#allocation5 + $0x90] sm:$0xff]
    %v146 = vld [vmem:[#allocation5 + $0x98] sm:$0xff]
    %v147 = vld [vmem:[#allocation5 + $0xa0] sm:$0xff]
    %v148 = vld [vmem:[#allocation5 + $0xa8] sm:$0xff]
    %v149 = vld [vmem:[#allocation5 + $0xb0] sm:$0xff]
    %v150 = vld [vmem:[#allocation5 + $0xb8] sm:$0xff]
    %v151 = vld [vmem:[#allocation5 + $0xc0] sm:$0xff]
    %v152 = vld [vmem:[#allocation5 + $0xc8] sm:$0xff]
    %v153 = vld [vmem:[#allocation5 + $0xd0] sm:$0xff]
    %v154 = vld [vmem:[#allocation5 + $0xd8] sm:$0xff]
    %v155 = vld [vmem:[#allocation5 + $0xe0] sm:$0xff]
    %v156 = vld [vmem:[#allocation5 + $0xe8] sm:$0xff]
    %v157 = vld [vmem:[#allocation5 + $0xf0] sm:$0xff]
    %v158 = vld [vmem:[#allocation5 + $0xf8] sm:$0xff]
    %v159 = vld [vmem:[#allocation5 + $0x100] sm:$0xff]
    %v160 = vld [vmem:[#allocation5 + $0x108] sm:$0xff]
    %v161 = vld [vmem:[#allocation5 + $0x110] sm:$0xff]
    %v162 = vld [vmem:[#allocation5 + $0x118] sm:$0xff]
    %v163 = vld [vmem:[#allocation5 + $0x120] sm:$0xff]
    %v164 = vld [vmem:[#allocation5 + $0x128] sm:$0xff]
    %v165 = vld [vmem:[#allocation5 + $0x130] sm:$0xff]
    %v166 = vld [vmem:[#allocation5 + $0x138] sm:$0xff]
    %v167 = vld [vmem:[#allocation5 + $0x140] sm:$0xff]
    %v168 = vld [vmem:[#allocation5 + $0x148] sm:$0xff]
    %v169 = vld [vmem:[#allocation5 + $0x150] sm:$0xff]
    %v170 = vld [vmem:[#allocation5 + $0x158] sm:$0xff]
    %v171 = vld [vmem:[#allocation5 + $0x160] sm:$0xff]
    %v172 = vld [vmem:[#allocation5 + $0x168] sm:$0xff]
    %v173 = vld [vmem:[#allocation5 + $0x170] sm:$0xff]
    %v174 = vld [vmem:[#allocation5 + $0x178] sm:$0xff]
    %v175 = vld [vmem:[#allocation5 + $0x180] sm:$0xff]
    %v176 = vld [vmem:[#allocation5 + $0x188] sm:$0xff]
    %v177 = vld [vmem:[#allocation5 + $0x190] sm:$0xff]
    %v178 = vld [vmem:[#allocation5 + $0x198] sm:$0xff]
    %v179 = vld [vmem:[#allocation5 + $0x1a0] sm:$0xff]
    %v180 = vld [vmem:[#allocation5 + $0x1a8] sm:$0xff]
    %v181 = vld [vmem:[#allocation5 + $0x1b0] sm:$0xff]
    %v182 = vld [vmem:[#allocation5 + $0x1b8] sm:$0xff]
    %v183 = vld [vmem:[#allocation5 + $0x1c0] sm:$0xff]
    %v184 = vld [vmem:[#allocation5 + $0x1c8] sm:$0xff]
    %v185 = vld [vmem:[#allocation5 + $0x1d0] sm:$0xff]
    %v186 = vld [vmem:[#allocation5 + $0x1d8] sm:$0xff]
    %v187 = vld [vmem:[#allocation5 + $0x1e0] sm:$0xff]
    %v188 = vld [vmem:[#allocation5 + $0x1e8] sm:$0xff]
    %v189 = vld [vmem:[#allocation5 + $0x1f0] sm:$0xff]
    %v190 = vld [vmem:[#allocation5 + $0x1f8] sm:$0xff]
    %v191 = vld [vmem:[#allocation5 + $0x200] sm:$0xff]
    %v192 = vld [vmem:[#allocation5 + $0x208] sm:$0xff]
    %v193 = vld [vmem:[#allocation5 + $0x210] sm:$0xff]
    %v194 = vld [vmem:[#allocation5 + $0x218] sm:$0xff]
    %v195 = vld [vmem:[#allocation5 + $0x220] sm:$0xff]
    %v196 = vld [vmem:[#allocation5 + $0x228] sm:$0xff]
    %v197 = vld [vmem:[#allocation5 + $0x230] sm:$0xff]
    %v198 = vld [vmem:[#allocation5 + $0x238] sm:$0xff]
    %v199 = vld [vmem:[#allocation5 + $0x240] sm:$0xff]
    %v200 = vld [vmem:[#allocation5 + $0x248] sm:$0xff]
    %v201 = vld [vmem:[#allocation5 + $0x250] sm:$0xff]
    %v202 = vld [vmem:[#allocation5 + $0x258] sm:$0xff]
    %v203 = vld [vmem:[#allocation5 + $0x260] sm:$0xff]
    %v204 = vld [vmem:[#allocation5 + $0x268] sm:$0xff]
    %v205 = vld [vmem:[#allocation5 + $0x270] sm:$0xff]
    %v206 = vld [vmem:[#allocation5 + $0x278] sm:$0xff]
    %v207 = vld [vmem:[#allocation5 + $0x280] sm:$0xff]
    %v208 = vld [vmem:[#allocation5 + $0x288] sm:$0xff]
    %v209 = vld [vmem:[#allocation5 + $0x290] sm:$0xff]
    %v210 = vld [vmem:[#allocation5 + $0x298] sm:$0xff]
    %v211 = vld [vmem:[#allocation5 + $0x2a0] sm:$0xff]
    %v212 = vld [vmem:[#allocation5 + $0x2a8] sm:$0xff]
    %v213 = vld [vmem:[#allocation5 + $0x2b0] sm:$0xff]
    %v214 = vld [vmem:[#allocation5 + $0x2b8] sm:$0xff]
    %v215 = vld [vmem:[#allocation5 + $0x2c0] sm:$0xff]
    %v216 = vld [vmem:[#allocation5 + $0x2c8] sm:$0xff]
    %v217 = vld [vmem:[#allocation5 + $0x2d0] sm:$0xff]
    %v218 = vld [vmem:[#allocation5 + $0x2d8] sm:$0xff]
    %v219 = vld [vmem:[#allocation5 + $0x2e0] sm:$0xff]
    %v220 = vld [vmem:[#allocation5 + $0x2e8] sm:$0xff]
    %v221 = vld [vmem:[#allocation5 + $0x2f0] sm:$0xff]
    %v222 = vld [vmem:[#allocation5 + $0x2f8] sm:$0xff]
    %v223 = vld [vmem:[#allocation5 + $0x300] sm:$0xff]
    %v224 = vld [vmem:[#allocation5 + $0x308] sm:$0xff]
    %v225 = vld [vmem:[#allocation5 + $0x310] sm:$0xff]
    %v226 = vld [vmem:[#allocation5 + $0x318] sm:$0xff]
    %v227 = vld [vmem:[#allocation5 + $0x320] sm:$0xff]
    %v228 = vld [vmem:[#allocation5 + $0x328] sm:$0xff]
    %v229 = vld [vmem:[#allocation5 + $0x330] sm:$0xff]
    %v230 = vld [vmem:[#allocation5 + $0x338] sm:$0xff]
    %v231 = vld [vmem:[#allocation5 + $0x340] sm:$0xff]
    %v232 = vld [vmem:[#allocation5 + $0x348] sm:$0xff]
    %v233 = vld [vmem:[#allocation5 + $0x350] sm:$0xff]
    %v234 = vld [vmem:[#allocation5 + $0x358] sm:$0xff]
    %v235 = vld [vmem:[#allocation5 + $0x360] sm:$0xff]
    %v236 = vld [vmem:[#allocation5 + $0x368] sm:$0xff]
    %v237 = vld [vmem:[#allocation5 + $0x370] sm:$0xff]
    %v238 = vld [vmem:[#allocation5 + $0x378] sm:$0xff]
    %v239 = vld [vmem:[#allocation5 + $0x380] sm:$0xff]
    %v240 = vld [vmem:[#allocation5 + $0x388] sm:$0xff]
    %v241 = vld [vmem:[#allocation5 + $0x390] sm:$0xff]
    %v242 = vld [vmem:[#allocation5 + $0x398] sm:$0xff]
    %v243 = vld [vmem:[#allocation5 + $0x3a0] sm:$0xff]
    %v244 = vld [vmem:[#allocation5 + $0x3a8] sm:$0xff]
    %v245 = vld [vmem:[#allocation5 + $0x3b0] sm:$0xff]
    %v246 = vld [vmem:[#allocation5 + $0x3b8] sm:$0xff]
    %v247 = vld [vmem:[#allocation5 + $0x3c0] sm:$0xff]
    %v248 = vld [vmem:[#allocation5 + $0x3c8] sm:$0xff]
    %v249 = vld [vmem:[#allocation5 + $0x3d0] sm:$0xff]
    %v250 = vld [vmem:[#allocation5 + $0x3d8] sm:$0xff]
    %v251 = vld [vmem:[#allocation5 + $0x3e0] sm:$0xff]
    %v252 = vld [vmem:[#allocation5 + $0x3e8] sm:$0xff]
    %v253 = vld [vmem:[#allocation5 + $0x3f0] sm:$0xff]
    %v254 = vld [vmem:[#allocation5 + $0x3f8] sm:$0xff]
    %v255 = vld [vmem:[#allocation7] sm:$0x3]
    %v384 = vunpack.c.l.b16 %v127
    %v385 = vunpack.c.h.b16 %v127
    %v386 = vunpack.c.l.b16 %v128
    %v387 = vunpack.c.h.b16 %v128
    %v388 = vunpack.c.l.b16 %v129
    %v389 = vunpack.c.h.b16 %v129
    %v390 = vunpack.c.l.b16 %v130
    %v391 = vunpack.c.h.b16 %v130
    %v392 = vunpack.c.l.b16 %v131
    %v393 = vunpack.c.h.b16 %v131
    %v394 = vunpack.c.l.b16 %v132
    %v395 = vunpack.c.h.b16 %v132
    %v396 = vunpack.c.l.b16 %v133
    %v397 = vunpack.c.h.b16 %v133
    %v398 = vunpack.c.l.b16 %v134
    %v399 = vunpack.c.h.b16 %v134
    %v400 = vunpack.c.l.b16 %v135
    %v401 = vunpack.c.h.b16 %v135
    %v402 = vunpack.c.l.b16 %v136
    %v403 = vunpack.c.h.b16 %v136
    %v404 = vunpack.c.l.b16 %v137
    %v405 = vunpack.c.h.b16 %v137
    %v406 = vunpack.c.l.b16 %v138
    %v407 = vunpack.c.h.b16 %v138
    %v408 = vunpack.c.l.b16 %v139
    %v409 = vunpack.c.h.b16 %v139
    %v410 = vunpack.c.l.b16 %v140
    %v411 = vunpack.c.h.b16 %v140
    %v412 = vunpack.c.l.b16 %v141
    %v413 = vunpack.c.h.b16 %v141
    %v414 = vunpack.c.l.b16 %v142
    %v415 = vunpack.c.h.b16 %v142
    %v416 = vunpack.c.l.b16 %v143
    %v417 = vunpack.c.h.b16 %v143
    %v418 = vunpack.c.l.b16 %v144
    %v419 = vunpack.c.h.b16 %v144
    %v420 = vunpack.c.l.b16 %v145
    %v421 = vunpack.c.h.b16 %v145
    %v422 = vunpack.c.l.b16 %v146
    %v423 = vunpack.c.h.b16 %v146
    %v424 = vunpack.c.l.b16 %v147
    %v425 = vunpack.c.h.b16 %v147
    %v426 = vunpack.c.l.b16 %v148
    %v427 = vunpack.c.h.b16 %v148
    %v428 = vunpack.c.l.b16 %v149
    %v429 = vunpack.c.h.b16 %v149
    %v430 = vunpack.c.l.b16 %v150
    %v431 = vunpack.c.h.b16 %v150
    %v432 = vunpack.c.l.b16 %v151
    %v433 = vunpack.c.h.b16 %v151
    %v434 = vunpack.c.l.b16 %v152
    %v435 = vunpack.c.h.b16 %v152
    %v436 = vunpack.c.l.b16 %v153
    %v437 = vunpack.c.h.b16 %v153
    %v438 = vunpack.c.l.b16 %v154
    %v439 = vunpack.c.h.b16 %v154
    %v440 = vunpack.c.l.b16 %v155
    %v441 = vunpack.c.h.b16 %v155
    %v442 = vunpack.c.l.b16 %v156
    %v443 = vunpack.c.h.b16 %v156
    %v444 = vunpack.c.l.b16 %v157
    %v445 = vunpack.c.h.b16 %v157
    %v446 = vunpack.c.l.b16 %v158
    %v447 = vunpack.c.h.b16 %v158
    %v448 = vunpack.c.l.b16 %v159
    %v449 = vunpack.c.h.b16 %v159
    %v450 = vunpack.c.l.b16 %v160
    %v451 = vunpack.c.h.b16 %v160
    %v452 = vunpack.c.l.b16 %v161
    %v453 = vunpack.c.h.b16 %v161
    %v454 = vunpack.c.l.b16 %v162
    %v455 = vunpack.c.h.b16 %v162
    %v456 = vunpack.c.l.b16 %v163
    %v457 = vunpack.c.h.b16 %v163
    %v458 = vunpack.c.l.b16 %v164
    %v459 = vunpack.c.h.b16 %v164
    %v460 = vunpack.c.l.b16 %v165
    %v461 = vunpack.c.h.b16 %v165
    %v462 = vunpack.c.l.b16 %v166
    %v463 = vunpack.c.h.b16 %v166
    %v464 = vunpack.c.l.b16 %v167
    %v465 = vunpack.c.h.b16 %v167
    %v466 = vunpack.c.l.b16 %v168
    %v467 = vunpack.c.h.b16 %v168
    %v468 = vunpack.c.l.b16 %v169
    %v469 = vunpack.c.h.b16 %v169
    %v470 = vunpack.c.l.b16 %v170
    %v471 = vunpack.c.h.b16 %v170
    %v472 = vunpack.c.l.b16 %v171
    %v473 = vunpack.c.h.b16 %v171
    %v474 = vunpack.c.l.b16 %v172
    %v475 = vunpack.c.h.b16 %v172
    %v476 = vunpack.c.l.b16 %v173
    %v477 = vunpack.c.h.b16 %v173
    %v478 = vunpack.c.l.b16 %v174
    %v479 = vunpack.c.h.b16 %v174
    %v480 = vunpack.c.l.b16 %v175
    %v481 = vunpack.c.h.b16 %v175
    %v482 = vunpack.c.l.b16 %v176
    %v483 = vunpack.c.h.b16 %v176
    %v484 = vunpack.c.l.b16 %v177
    %v485 = vunpack.c.h.b16 %v177
    %v486 = vunpack.c.l.b16 %v178
    %v487 = vunpack.c.h.b16 %v178
    %v488 = vunpack.c.l.b16 %v179
    %v489 = vunpack.c.h.b16 %v179
    %v490 = vunpack.c.l.b16 %v180
    %v491 = vunpack.c.h.b16 %v180
    %v492 = vunpack.c.l.b16 %v181
    %v493 = vunpack.c.h.b16 %v181
    %v494 = vunpack.c.l.b16 %v182
    %v495 = vunpack.c.h.b16 %v182
    %v496 = vunpack.c.l.b16 %v183
    %v497 = vunpack.c.h.b16 %v183
    %v498 = vunpack.c.l.b16 %v184
    %v499 = vunpack.c.h.b16 %v184
    %v500 = vunpack.c.l.b16 %v185
    %v501 = vunpack.c.h.b16 %v185
    %v502 = vunpack.c.l.b16 %v186
    %v503 = vunpack.c.h.b16 %v186
    %v504 = vunpack.c.l.b16 %v187
    %v505 = vunpack.c.h.b16 %v187
    %v506 = vunpack.c.l.b16 %v188
    %v507 = vunpack.c.h.b16 %v188
    %v508 = vunpack.c.l.b16 %v189
    %v509 = vunpack.c.h.b16 %v189
    %v510 = vunpack.c.l.b16 %v190
    %v511 = vunpack.c.h.b16 %v190
    %v512 = vunpack.c.l.b16 %v191
    %v513 = vunpack.c.h.b16 %v191
    %v514 = vunpack.c.l.b16 %v192
    %v515 = vunpack.c.h.b16 %v192
    %v516 = vunpack.c.l.b16 %v193
    %v517 = vunpack.c.h.b16 %v193
    %v518 = vunpack.c.l.b16 %v194
    %v519 = vunpack.c.h.b16 %v194
    %v520 = vunpack.c.l.b16 %v195
    %v521 = vunpack.c.h.b16 %v195
    %v522 = vunpack.c.l.b16 %v196
    %v523 = vunpack.c.h.b16 %v196
    %v524 = vunpack.c.l.b16 %v197
    %v525 = vunpack.c.h.b16 %v197
    %v526 = vunpack.c.l.b16 %v198
    %v527 = vunpack.c.h.b16 %v198
    %v528 = vunpack.c.l.b16 %v199
    %v529 = vunpack.c.h.b16 %v199
    %v530 = vunpack.c.l.b16 %v200
    %v531 = vunpack.c.h.b16 %v200
    %v532 = vunpack.c.l.b16 %v201
    %v533 = vunpack.c.h.b16 %v201
    %v534 = vunpack.c.l.b16 %v202
    %v535 = vunpack.c.h.b16 %v202
    %v536 = vunpack.c.l.b16 %v203
    %v537 = vunpack.c.h.b16 %v203
    %v538 = vunpack.c.l.b16 %v204
    %v539 = vunpack.c.h.b16 %v204
    %v540 = vunpack.c.l.b16 %v205
    %v541 = vunpack.c.h.b16 %v205
    %v542 = vunpack.c.l.b16 %v206
    %v543 = vunpack.c.h.b16 %v206
    %v544 = vunpack.c.l.b16 %v207
    %v545 = vunpack.c.h.b16 %v207
    %v546 = vunpack.c.l.b16 %v208
    %v547 = vunpack.c.h.b16 %v208
    %v548 = vunpack.c.l.b16 %v209
    %v549 = vunpack.c.h.b16 %v209
    %v550 = vunpack.c.l.b16 %v210
    %v551 = vunpack.c.h.b16 %v210
    %v552 = vunpack.c.l.b16 %v211
    %v553 = vunpack.c.h.b16 %v211
    %v554 = vunpack.c.l.b16 %v212
    %v555 = vunpack.c.h.b16 %v212
    %v556 = vunpack.c.l.b16 %v213
    %v557 = vunpack.c.h.b16 %v213
    %v558 = vunpack.c.l.b16 %v214
    %v559 = vunpack.c.h.b16 %v214
    %v560 = vunpack.c.l.b16 %v215
    %v561 = vunpack.c.h.b16 %v215
    %v562 = vunpack.c.l.b16 %v216
    %v563 = vunpack.c.h.b16 %v216
    %v564 = vunpack.c.l.b16 %v217
    %v565 = vunpack.c.h.b16 %v217
    %v566 = vunpack.c.l.b16 %v218
    %v567 = vunpack.c.h.b16 %v218
    %v568 = vunpack.c.l.b16 %v219
    %v569 = vunpack.c.h.b16 %v219
    %v570 = vunpack.c.l.b16 %v220
    %v571 = vunpack.c.h.b16 %v220
    %v572 = vunpack.c.l.b16 %v221
    %v573 = vunpack.c.h.b16 %v221
    %v574 = vunpack.c.l.b16 %v222
    %v575 = vunpack.c.h.b16 %v222
    %v576 = vunpack.c.l.b16 %v223
    %v577 = vunpack.c.h.b16 %v223
    %v578 = vunpack.c.l.b16 %v224
    %v579 = vunpack.c.h.b16 %v224
    %v580 = vunpack.c.l.b16 %v225
    %v581 = vunpack.c.h.b16 %v225
    %v582 = vunpack.c.l.b16 %v226
    %v583 = vunpack.c.h.b16 %v226
    %v584 = vunpack.c.l.b16 %v227
    %v585 = vunpack.c.h.b16 %v227
    %v586 = vunpack.c.l.b16 %v228
    %v587 = vunpack.c.h.b16 %v228
    %v588 = vunpack.c.l.b16 %v229
    %v589 = vunpack.c.h.b16 %v229
    %v590 = vunpack.c.l.b16 %v230
    %v591 = vunpack.c.h.b16 %v230
    %v592 = vunpack.c.l.b16 %v231
    %v593 = vunpack.c.h.b16 %v231
    %v594 = vunpack.c.l.b16 %v232
    %v595 = vunpack.c.h.b16 %v232
    %v596 = vunpack.c.l.b16 %v233
    %v597 = vunpack.c.h.b16 %v233
    %v598 = vunpack.c.l.b16 %v234
    %v599 = vunpack.c.h.b16 %v234
    %v600 = vunpack.c.l.b16 %v235
    %v601 = vunpack.c.h.b16 %v235
    %v602 = vunpack.c.l.b16 %v236
    %v603 = vunpack.c.h.b16 %v236
    %v604 = vunpack.c.l.b16 %v237
    %v605 = vunpack.c.h.b16 %v237
    %v606 = vunpack.c.l.b16 %v238
    %v607 = vunpack.c.h.b16 %v238
    %v608 = vunpack.c.l.b16 %v239
    %v609 = vunpack.c.h.b16 %v239
    %v610 = vunpack.c.l.b16 %v240
    %v611 = vunpack.c.h.b16 %v240
    %v612 = vunpack.c.l.b16 %v241
    %v613 = vunpack.c.h.b16 %v241
    %v614 = vunpack.c.l.b16 %v242
    %v615 = vunpack.c.h.b16 %v242
    %v616 = vunpack.c.l.b16 %v243
    %v617 = vunpack.c.h.b16 %v243
    %v618 = vunpack.c.l.b16 %v244
    %v619 = vunpack.c.h.b16 %v244
    %v620 = vunpack.c.l.b16 %v245
    %v621 = vunpack.c.h.b16 %v245
    %v622 = vunpack.c.l.b16 %v246
    %v623 = vunpack.c.h.b16 %v246
    %v624 = vunpack.c.l.b16 %v247
    %v625 = vunpack.c.h.b16 %v247
    %v626 = vunpack.c.l.b16 %v248
    %v627 = vunpack.c.h.b16 %v248
    %v628 = vunpack.c.l.b16 %v249
    %v629 = vunpack.c.h.b16 %v249
    %v630 = vunpack.c.l.b16 %v250
    %v631 = vunpack.c.h.b16 %v250
    %v632 = vunpack.c.l.b16 %v251
    %v633 = vunpack.c.h.b16 %v251
    %v634 = vunpack.c.l.b16 %v252
    %v635 = vunpack.c.h.b16 %v252
    %v636 = vunpack.c.l.b16 %v253
    %v637 = vunpack.c.h.b16 %v253
    %v638 = vunpack.c.l.b16 %v254
    %v639 = vunpack.c.h.b16 %v254
    %v640 = vpack.c.b16 %v386, %v384
    %v641 = vpack.c.b16 %v387, %v385
    %v642 = vpack.c.b16 %v390, %v388
    %v643 = vpack.c.b16 %v391, %v389
    %v644 = vpack.c.b16 %v394, %v392
    %v645 = vpack.c.b16 %v395, %v393
    %v646 = vpack.c.b16 %v398, %v396
    %v647 = vpack.c.b16 %v399, %v397
    %v648 = vpack.c.b16 %v402, %v400
    %v649 = vpack.c.b16 %v403, %v401
    %v650 = vpack.c.b16 %v406, %v404
    %v651 = vpack.c.b16 %v407, %v405
    %v652 = vpack.c.b16 %v410, %v408
    %v653 = vpack.c.b16 %v411, %v409
    %v654 = vpack.c.b16 %v414, %v412
    %v655 = vpack.c.b16 %v415, %v413
    %v656 = vpack.c.b16 %v418, %v416
    %v657 = vpack.c.b16 %v419, %v417
    %v658 = vpack.c.b16 %v422, %v420
    %v659 = vpack.c.b16 %v423, %v421
    %v660 = vpack.c.b16 %v426, %v424
    %v661 = vpack.c.b16 %v427, %v425
    %v662 = vpack.c.b16 %v430, %v428
    %v663 = vpack.c.b16 %v431, %v429
    %v664 = vpack.c.b16 %v434, %v432
    %v665 = vpack.c.b16 %v435, %v433
    %v666 = vpack.c.b16 %v438, %v436
    %v667 = vpack.c.b16 %v439, %v437
    %v668 = vpack.c.b16 %v442, %v440
    %v669 = vpack.c.b16 %v443, %v441
    %v670 = vpack.c.b16 %v446, %v444
    %v671 = vpack.c.b16 %v447, %v445
    %v672 = vpack.c.b16 %v450, %v448
    %v673 = vpack.c.b16 %v451, %v449
    %v674 = vpack.c.b16 %v454, %v452
    %v675 = vpack.c.b16 %v455, %v453
    %v676 = vpack.c.b16 %v458, %v456
    %v677 = vpack.c.b16 %v459, %v457
    %v678 = vpack.c.b16 %v462, %v460
    %v679 = vpack.c.b16 %v463, %v461
    %v680 = vpack.c.b16 %v466, %v464
    %v681 = vpack.c.b16 %v467, %v465
    %v682 = vpack.c.b16 %v470, %v468
    %v683 = vpack.c.b16 %v471, %v469
    %v684 = vpack.c.b16 %v474, %v472
    %v685 = vpack.c.b16 %v475, %v473
    %v686 = vpack.c.b16 %v478, %v476
    %v687 = vpack.c.b16 %v479, %v477
    %v688 = vpack.c.b16 %v482, %v480
    %v689 = vpack.c.b16 %v483, %v481
    %v690 = vpack.c.b16 %v486, %v484
    %v691 = vpack.c.b16 %v487, %v485
    %v692 = vpack.c.b16 %v490, %v488
    %v693 = vpack.c.b16 %v491, %v489
    %v694 = vpack.c.b16 %v494, %v492
    %v695 = vpack.c.b16 %v495, %v493
    %v696 = vpack.c.b16 %v498, %v496
    %v697 = vpack.c.b16 %v499, %v497
    %v698 = vpack.c.b16 %v502, %v500
    %v699 = vpack.c.b16 %v503, %v501
    %v700 = vpack.c.b16 %v506, %v504
    %v701 = vpack.c.b16 %v507, %v505
    %v702 = vpack.c.b16 %v510, %v508
    %v703 = vpack.c.b16 %v511, %v509
    %v704 = vpack.c.b16 %v514, %v512
    %v705 = vpack.c.b16 %v515, %v513
    %v706 = vpack.c.b16 %v518, %v516
    %v707 = vpack.c.b16 %v519, %v517
    %v708 = vpack.c.b16 %v522, %v520
    %v709 = vpack.c.b16 %v523, %v521
    %v710 = vpack.c.b16 %v526, %v524
    %v711 = vpack.c.b16 %v527, %v525
    %v712 = vpack.c.b16 %v530, %v528
    %v713 = vpack.c.b16 %v531, %v529
    %v714 = vpack.c.b16 %v534, %v532
    %v715 = vpack.c.b16 %v535, %v533
    %v716 = vpack.c.b16 %v538, %v536
    %v717 = vpack.c.b16 %v539, %v537
    %v718 = vpack.c.b16 %v542, %v540
    %v719 = vpack.c.b16 %v543, %v541
    %v720 = vpack.c.b16 %v546, %v544
    %v721 = vpack.c.b16 %v547, %v545
    %v722 = vpack.c.b16 %v550, %v548
    %v723 = vpack.c.b16 %v551, %v549
    %v724 = vpack.c.b16 %v554, %v552
    %v725 = vpack.c.b16 %v555, %v553
    %v726 = vpack.c.b16 %v558, %v556
    %v727 = vpack.c.b16 %v559, %v557
    %v728 = vpack.c.b16 %v562, %v560
    %v729 = vpack.c.b16 %v563, %v561
    %v730 = vpack.c.b16 %v566, %v564
    %v731 = vpack.c.b16 %v567, %v565
    %v732 = vpack.c.b16 %v570, %v568
    %v733 = vpack.c.b16 %v571, %v569
    %v734 = vpack.c.b16 %v574, %v572
    %v735 = vpack.c.b16 %v575, %v573
    %v736 = vpack.c.b16 %v578, %v576
    %v737 = vpack.c.b16 %v579, %v577
    %v738 = vpack.c.b16 %v582, %v580
    %v739 = vpack.c.b16 %v583, %v581
    %v740 = vpack.c.b16 %v586, %v584
    %v741 = vpack.c.b16 %v587, %v585
    %v742 = vpack.c.b16 %v590, %v588
    %v743 = vpack.c.b16 %v591, %v589
    %v744 = vpack.c.b16 %v594, %v592
    %v745 = vpack.c.b16 %v595, %v593
    %v746 = vpack.c.b16 %v598, %v596
    %v747 = vpack.c.b16 %v599, %v597
    %v748 = vpack.c.b16 %v602, %v600
    %v749 = vpack.c.b16 %v603, %v601
    %v750 = vpack.c.b16 %v606, %v604
    %v751 = vpack.c.b16 %v607, %v605
    %v752 = vpack.c.b16 %v610, %v608
    %v753 = vpack.c.b16 %v611, %v609
    %v754 = vpack.c.b16 %v614, %v612
    %v755 = vpack.c.b16 %v615, %v613
    %v756 = vpack.c.b16 %v618, %v616
    %v757 = vpack.c.b16 %v619, %v617
    %v758 = vpack.c.b16 %v622, %v620
    %v759 = vpack.c.b16 %v623, %v621
    %v760 = vpack.c.b16 %v626, %v624
    %v761 = vpack.c.b16 %v627, %v625
    %v762 = vpack.c.b16 %v630, %v628
    %v763 = vpack.c.b16 %v631, %v629
    %v764 = vpack.c.b16 %v634, %v632
    %v765 = vpack.c.b16 %v635, %v633
    %v766 = vpack.c.b16 %v638, %v636
    %v767 = vpack.c.b16 %v639, %v637
    %896 = vmatpush.bf16.msra.mxu0 %v654
    %897 = vmatpush.bf16.msra.mxu0 %v652
    %898 = vmatpush.bf16.msra.mxu0 %v650
    %899 = vmatpush.bf16.msra.mxu0 %v648
    %900 = vmatpush.bf16.msra.mxu0 %v646
    %901 = vmatpush.bf16.msra.mxu0 %v644
    %902 = vmatpush.bf16.msra.mxu0 %v642
    %903 = vmatpush.bf16.msra.mxu0 %v640
    %904 = vmatmul.bf16.gmra.mxu0 %v119
    %v905 = vpop.f32.mrf.mxu0
    %v906 = vadd.f32 0.0, %v905
    %v907 = vpop.f32.mrf.mxu0
    %v908 = vadd.f32 0.0, %v907
    %909 = vdwg.mxu0
    %910 = vmatpush.bf16.msra.mxu0 %v670
    %911 = vmatpush.bf16.msra.mxu0 %v668
    %912 = vmatpush.bf16.msra.mxu0 %v666
    %913 = vmatpush.bf16.msra.mxu0 %v664
    %914 = vmatpush.bf16.msra.mxu0 %v662
    %915 = vmatpush.bf16.msra.mxu0 %v660
    %916 = vmatpush.bf16.msra.mxu0 %v658
    %917 = vmatpush.bf16.msra.mxu0 %v656
    %918 = vmatmul.bf16.gmra.mxu0 %v120
    %v919 = vpop.f32.mrf.mxu0
    %v920 = vadd.f32 %v906, %v919
    %v921 = vpop.f32.mrf.mxu0
    %v922 = vadd.f32 %v908, %v921
    %923 = vdwg.mxu0
    %924 = vmatpush.bf16.msra.mxu0 %v686
    %925 = vmatpush.bf16.msra.mxu0 %v684
    %926 = vmatpush.bf16.msra.mxu0 %v682
    %927 = vmatpush.bf16.msra.mxu0 %v680
    %928 = vmatpush.bf16.msra.mxu0 %v678
    %929 = vmatpush.bf16.msra.mxu0 %v676
    %930 = vmatpush.bf16.msra.mxu0 %v674
    %931 = vmatpush.bf16.msra.mxu0 %v672
    %932 = vmatmul.bf16.gmra.mxu0 %v121
    %v933 = vpop.f32.mrf.mxu0
    %v934 = vadd.f32 %v920, %v933
    %v935 = vpop.f32.mrf.mxu0
    %v936 = vadd.f32 %v922, %v935
    %937 = vdwg.mxu0
    %938 = vmatpush.bf16.msra.mxu0 %v702
    %939 = vmatpush.bf16.msra.mxu0 %v700
    %940 = vmatpush.bf16.msra.mxu0 %v698
    %941 = vmatpush.bf16.msra.mxu0 %v696
    %942 = vmatpush.bf16.msra.mxu0 %v694
    %943 = vmatpush.bf16.msra.mxu0 %v692
    %944 = vmatpush.bf16.msra.mxu0 %v690
    %945 = vmatpush.bf16.msra.mxu0 %v688
    %946 = vmatmul.bf16.gmra.mxu0 %v122
    %v947 = vpop.f32.mrf.mxu0
    %v948 = vadd.f32 %v934, %v947
    %v949 = vpop.f32.mrf.mxu0
    %v950 = vadd.f32 %v936, %v949
    %951 = vdwg.mxu0
    %952 = vmatpush.bf16.msra.mxu0 %v718
    %953 = vmatpush.bf16.msra.mxu0 %v716
    %954 = vmatpush.bf16.msra.mxu0 %v714
    %955 = vmatpush.bf16.msra.mxu0 %v712
    %956 = vmatpush.bf16.msra.mxu0 %v710
    %957 = vmatpush.bf16.msra.mxu0 %v708
    %958 = vmatpush.bf16.msra.mxu0 %v706
    %959 = vmatpush.bf16.msra.mxu0 %v704
    %960 = vmatmul.bf16.gmra.mxu0 %v123
    %v961 = vpop.f32.mrf.mxu0
    %v962 = vadd.f32 %v948, %v961
    %v963 = vpop.f32.mrf.mxu0
    %v964 = vadd.f32 %v950, %v963
    %965 = vdwg.mxu0
    %966 = vmatpush.bf16.msra.mxu0 %v734
    %967 = vmatpush.bf16.msra.mxu0 %v732
    %968 = vmatpush.bf16.msra.mxu0 %v730
    %969 = vmatpush.bf16.msra.mxu0 %v728
    %970 = vmatpush.bf16.msra.mxu0 %v726
    %971 = vmatpush.bf16.msra.mxu0 %v724
    %972 = vmatpush.bf16.msra.mxu0 %v722
    %973 = vmatpush.bf16.msra.mxu0 %v720
    %974 = vmatmul.bf16.gmra.mxu0 %v124
    %v975 = vpop.f32.mrf.mxu0
    %v976 = vadd.f32 %v962, %v975
    %v977 = vpop.f32.mrf.mxu0
    %v978 = vadd.f32 %v964, %v977
    %979 = vdwg.mxu0
    %980 = vmatpush.bf16.msra.mxu0 %v750
    %981 = vmatpush.bf16.msra.mxu0 %v748
    %982 = vmatpush.bf16.msra.mxu0 %v746
    %983 = vmatpush.bf16.msra.mxu0 %v744
    %984 = vmatpush.bf16.msra.mxu0 %v742
    %985 = vmatpush.bf16.msra.mxu0 %v740
    %986 = vmatpush.bf16.msra.mxu0 %v738
    %987 = vmatpush.bf16.msra.mxu0 %v736
    %988 = vmatmul.bf16.gmra.mxu0 %v125
    %v989 = vpop.f32.mrf.mxu0
    %v990 = vadd.f32 %v976, %v989
    %v991 = vpop.f32.mrf.mxu0
    %v992 = vadd.f32 %v978, %v991
    %993 = vdwg.mxu0
    %994 = vmatpush.bf16.msra.mxu0 %v766
    %995 = vmatpush.bf16.msra.mxu0 %v764
    %996 = vmatpush.bf16.msra.mxu0 %v762
    %997 = vmatpush.bf16.msra.mxu0 %v760
    %998 = vmatpush.bf16.msra.mxu0 %v758
    %999 = vmatpush.bf16.msra.mxu0 %v756
    %1000 = vmatpush.bf16.msra.mxu0 %v754
    %1001 = vmatpush.bf16.msra.mxu0 %v752
    %1002 = vmatmul.bf16.gmra.mxu0 %v126
    %v1003 = vpop.f32.mrf.mxu0
    %v1004 = vadd.f32 %v990, %v1003
    %v1005 = vpop.f32.mrf.mxu0
    %v1006 = vadd.f32 %v992, %v1005
    %1007 = vdwg.mxu0
    %1008 = vmatpush.bf16.msra.mxu0 %v655
    %1009 = vmatpush.bf16.msra.mxu0 %v653
    %1010 = vmatpush.bf16.msra.mxu0 %v651
    %1011 = vmatpush.bf16.msra.mxu0 %v649
    %1012 = vmatpush.bf16.msra.mxu0 %v647
    %1013 = vmatpush.bf16.msra.mxu0 %v645
    %1014 = vmatpush.bf16.msra.mxu0 %v643
    %1015 = vmatpush.bf16.msra.mxu0 %v641
    %1016 = vmatmul.bf16.gmra.mxu0 %v119
    %v1017 = vpop.f32.mrf.mxu0
    %v1018 = vadd.f32 0.0, %v1017
    %v1019 = vpop.f32.mrf.mxu0
    %v1020 = vadd.f32 0.0, %v1019
    %1021 = vdwg.mxu0
    %1022 = vmatpush.bf16.msra.mxu0 %v671
    %1023 = vmatpush.bf16.msra.mxu0 %v669
    %1024 = vmatpush.bf16.msra.mxu0 %v667
    %1025 = vmatpush.bf16.msra.mxu0 %v665
    %1026 = vmatpush.bf16.msra.mxu0 %v663
    %1027 = vmatpush.bf16.msra.mxu0 %v661
    %1028 = vmatpush.bf16.msra.mxu0 %v659
    %1029 = vmatpush.bf16.msra.mxu0 %v657
    %1030 = vmatmul.bf16.gmra.mxu0 %v120
    %v1031 = vpop.f32.mrf.mxu0
    %v1032 = vadd.f32 %v1018, %v1031
    %v1033 = vpop.f32.mrf.mxu0
    %v1034 = vadd.f32 %v1020, %v1033
    %1035 = vdwg.mxu0
    %1036 = vmatpush.bf16.msra.mxu0 %v687
    %1037 = vmatpush.bf16.msra.mxu0 %v685
    %1038 = vmatpush.bf16.msra.mxu0 %v683
    %1039 = vmatpush.bf16.msra.mxu0 %v681
    %1040 = vmatpush.bf16.msra.mxu0 %v679
    %1041 = vmatpush.bf16.msra.mxu0 %v677
    %1042 = vmatpush.bf16.msra.mxu0 %v675
    %1043 = vmatpush.bf16.msra.mxu0 %v673
    %1044 = vmatmul.bf16.gmra.mxu0 %v121
    %v1045 = vpop.f32.mrf.mxu0
    %v1046 = vadd.f32 %v1032, %v1045
    %v1047 = vpop.f32.mrf.mxu0
    %v1048 = vadd.f32 %v1034, %v1047
    %1049 = vdwg.mxu0
    %1050 = vmatpush.bf16.msra.mxu0 %v703
    %1051 = vmatpush.bf16.msra.mxu0 %v701
    %1052 = vmatpush.bf16.msra.mxu0 %v699
    %1053 = vmatpush.bf16.msra.mxu0 %v697
    %1054 = vmatpush.bf16.msra.mxu0 %v695
    %1055 = vmatpush.bf16.msra.mxu0 %v693
    %1056 = vmatpush.bf16.msra.mxu0 %v691
    %1057 = vmatpush.bf16.msra.mxu0 %v689
    %1058 = vmatmul.bf16.gmra.mxu0 %v122
    %v1059 = vpop.f32.mrf.mxu0
    %v1060 = vadd.f32 %v1046, %v1059
    %v1061 = vpop.f32.mrf.mxu0
    %v1062 = vadd.f32 %v1048, %v1061
    %1063 = vdwg.mxu0
    %1064 = vmatpush.bf16.msra.mxu0 %v719
    %1065 = vmatpush.bf16.msra.mxu0 %v717
    %1066 = vmatpush.bf16.msra.mxu0 %v715
    %1067 = vmatpush.bf16.msra.mxu0 %v713
    %1068 = vmatpush.bf16.msra.mxu0 %v711
    %1069 = vmatpush.bf16.msra.mxu0 %v709
    %1070 = vmatpush.bf16.msra.mxu0 %v707
    %1071 = vmatpush.bf16.msra.mxu0 %v705
    %1072 = vmatmul.bf16.gmra.mxu0 %v123
    %v1073 = vpop.f32.mrf.mxu0
    %v1074 = vadd.f32 %v1060, %v1073
    %v1075 = vpop.f32.mrf.mxu0
    %v1076 = vadd.f32 %v1062, %v1075
    %1077 = vdwg.mxu0
    %1078 = vmatpush.bf16.msra.mxu0 %v735
    %1079 = vmatpush.bf16.msra.mxu0 %v733
    %1080 = vmatpush.bf16.msra.mxu0 %v731
    %1081 = vmatpush.bf16.msra.mxu0 %v729
    %1082 = vmatpush.bf16.msra.mxu0 %v727
    %1083 = vmatpush.bf16.msra.mxu0 %v725
    %1084 = vmatpush.bf16.msra.mxu0 %v723
    %1085 = vmatpush.bf16.msra.mxu0 %v721
    %1086 = vmatmul.bf16.gmra.mxu0 %v124
    %v1087 = vpop.f32.mrf.mxu0
    %v1088 = vadd.f32 %v1074, %v1087
    %v1089 = vpop.f32.mrf.mxu0
    %v1090 = vadd.f32 %v1076, %v1089
    %1091 = vdwg.mxu0
    %1092 = vmatpush.bf16.msra.mxu0 %v751
    %1093 = vmatpush.bf16.msra.mxu0 %v749
    %1094 = vmatpush.bf16.msra.mxu0 %v747
    %1095 = vmatpush.bf16.msra.mxu0 %v745
    %1096 = vmatpush.bf16.msra.mxu0 %v743
    %1097 = vmatpush.bf16.msra.mxu0 %v741
    %1098 = vmatpush.bf16.msra.mxu0 %v739
    %1099 = vmatpush.bf16.msra.mxu0 %v737
    %1100 = vmatmul.bf16.gmra.mxu0 %v125
    %v1101 = vpop.f32.mrf.mxu0
    %v1102 = vadd.f32 %v1088, %v1101
    %v1103 = vpop.f32.mrf.mxu0
    %v1104 = vadd.f32 %v1090, %v1103
    %1105 = vdwg.mxu0
    %1106 = vmatpush.bf16.msra.mxu0 %v767
    %1107 = vmatpush.bf16.msra.mxu0 %v765
    %1108 = vmatpush.bf16.msra.mxu0 %v763
    %1109 = vmatpush.bf16.msra.mxu0 %v761
    %1110 = vmatpush.bf16.msra.mxu0 %v759
    %1111 = vmatpush.bf16.msra.mxu0 %v757
    %1112 = vmatpush.bf16.msra.mxu0 %v755
    %1113 = vmatpush.bf16.msra.mxu0 %v753
    %1114 = vmatmul.bf16.gmra.mxu0 %v126
    %v1115 = vpop.f32.mrf.mxu0
    %v1116 = vadd.f32 %v1102, %v1115
    %v1117 = vpop.f32.mrf.mxu0
    %v1118 = vadd.f32 %v1104, %v1117
    %1119 = vdwg.mxu0
    %v1120 = vpack.c.bf16 %v1116, %v1004
    %v1121 = vpack.c.bf16 %v1118, %v1006
    %v1123 = vperm.slane %v255, 0
    %v1124 = vperm.slane %v255, 1
    %v1127 = vpack.c.bf16 %v1124, %v1123
    %v1129 = vunpack.c.l.b16 %v1127
    %v1130 = vunpack.c.h.b16 %v1127
    %v1131 = vpack.c.b16 %v1129, %v1129
    %v1132 = vpack.c.b16 %v1130, %v1130
    %v1134 = vpack.i.b16 %v1131, %v1131
    %v1136 = vperm.slane %v1134, 0
    %v1138 = vpack.i.b16 %v1132, %v1132
    %v1140 = vperm.slane %v1138, 0
    %v1141 = vunpack.c.l.bf16 %v1120
    %v1142 = vunpack.c.h.bf16 %v1120
    %v1143 = vunpack.c.l.bf16 %v1121
    %v1144 = vunpack.c.h.bf16 %v1121
    %v1145 = vunpack.c.l.bf16 %v1136
    %v1146 = vunpack.c.l.bf16 %v1140
    %v1147 = vadd.f32 %v1141, %v1145
    %v1148 = vadd.f32 %v1142, %v1146
    %v1149 = vadd.f32 %v1143, %v1145
    %v1150 = vadd.f32 %v1144, %v1146
    %v1151 = vpack.c.bf16 %v1148, %v1147
    %v1152 = vpack.c.bf16 %v1150, %v1149
    %v1153 = vunpack.c.l.bf16 %v1151
    %v1154 = vunpack.c.h.bf16 %v1151
    %v1155 = vunpack.c.l.bf16 %v1152
    %v1156 = vunpack.c.h.bf16 %v1152
    %v1157 = vmax.f32 %v1153, 0.0
    %v1158 = vmax.f32 %v1154, 0.0
    %v1159 = vmax.f32 %v1155, 0.0
    %v1160 = vmax.f32 %v1156, 0.0
    %v1161 = vpack.c.bf16 %v1159, %v1157
    %v1162 = vpack.c.bf16 %v1160, %v1158
    %v1163 = vld [vmem:[#allocation8] sm:$0xf]
    %v1164 = vld [vmem:[#allocation8 + $0x4] sm:$0xf]
    %v1165 = vld [vmem:[#allocation8 + $0x8] sm:$0xf]
    %v1166 = vld [vmem:[#allocation8 + $0xc] sm:$0xf]
    %v1167 = vld [vmem:[#allocation8 + $0x10] sm:$0xf]
    %v1168 = vld [vmem:[#allocation8 + $0x14] sm:$0xf]
    %v1169 = vld [vmem:[#allocation8 + $0x18] sm:$0xf]
    %v1170 = vld [vmem:[#allocation8 + $0x1c] sm:$0xf]
    %v1171 = vld [vmem:[#allocation8 + $0x20] sm:$0xf]
    %v1172 = vld [vmem:[#allocation8 + $0x24] sm:$0xf]
    %v1173 = vld [vmem:[#allocation8 + $0x28] sm:$0xf]
    %v1174 = vld [vmem:[#allocation8 + $0x2c] sm:$0xf]
    %v1175 = vld [vmem:[#allocation8 + $0x30] sm:$0xf]
    %v1176 = vld [vmem:[#allocation8 + $0x34] sm:$0xf]
    %v1177 = vld [vmem:[#allocation8 + $0x38] sm:$0xf]
    %v1178 = vld [vmem:[#allocation8 + $0x3c] sm:$0xf]
    %v1179 = vld [vmem:[#allocation8 + $0x40] sm:$0xf]
    %v1180 = vld [vmem:[#allocation8 + $0x44] sm:$0xf]
    %v1181 = vld [vmem:[#allocation8 + $0x48] sm:$0xf]
    %v1182 = vld [vmem:[#allocation8 + $0x4c] sm:$0xf]
    %v1183 = vld [vmem:[#allocation8 + $0x50] sm:$0xf]
    %v1184 = vld [vmem:[#allocation8 + $0x54] sm:$0xf]
    %v1185 = vld [vmem:[#allocation8 + $0x58] sm:$0xf]
    %v1186 = vld [vmem:[#allocation8 + $0x5c] sm:$0xf]
    %v1187 = vld [vmem:[#allocation8 + $0x60] sm:$0xf]
    %v1188 = vld [vmem:[#allocation8 + $0x64] sm:$0xf]
    %v1189 = vld [vmem:[#allocation8 + $0x68] sm:$0xf]
    %v1190 = vld [vmem:[#allocation8 + $0x6c] sm:$0xf]
    %v1191 = vld [vmem:[#allocation8 + $0x70] sm:$0xf]
    %v1192 = vld [vmem:[#allocation8 + $0x74] sm:$0xf]
    %v1193 = vld [vmem:[#allocation8 + $0x78] sm:$0xf]
    %v1194 = vld [vmem:[#allocation8 + $0x7c] sm:$0xf]
    %v1195 = vld [vmem:[%s4] sm:$0x1]
    %v1228 = vunpack.c.l.b16 %v1163
    %v1229 = vunpack.c.l.b16 %v1164
    %v1230 = vunpack.c.l.b16 %v1165
    %v1231 = vunpack.c.l.b16 %v1166
    %v1232 = vunpack.c.l.b16 %v1167
    %v1233 = vunpack.c.l.b16 %v1168
    %v1234 = vunpack.c.l.b16 %v1169
    %v1235 = vunpack.c.l.b16 %v1170
    %v1236 = vunpack.c.l.b16 %v1171
    %v1237 = vunpack.c.l.b16 %v1172
    %v1238 = vunpack.c.l.b16 %v1173
    %v1239 = vunpack.c.l.b16 %v1174
    %v1240 = vunpack.c.l.b16 %v1175
    %v1241 = vunpack.c.l.b16 %v1176
    %v1242 = vunpack.c.l.b16 %v1177
    %v1243 = vunpack.c.l.b16 %v1178
    %v1244 = vunpack.c.l.b16 %v1179
    %v1245 = vunpack.c.l.b16 %v1180
    %v1246 = vunpack.c.l.b16 %v1181
    %v1247 = vunpack.c.l.b16 %v1182
    %v1248 = vunpack.c.l.b16 %v1183
    %v1249 = vunpack.c.l.b16 %v1184
    %v1250 = vunpack.c.l.b16 %v1185
    %v1251 = vunpack.c.l.b16 %v1186
    %v1252 = vunpack.c.l.b16 %v1187
    %v1253 = vunpack.c.l.b16 %v1188
    %v1254 = vunpack.c.l.b16 %v1189
    %v1255 = vunpack.c.l.b16 %v1190
    %v1256 = vunpack.c.l.b16 %v1191
    %v1257 = vunpack.c.l.b16 %v1192
    %v1258 = vunpack.c.l.b16 %v1193
    %v1259 = vunpack.c.l.b16 %v1194
    %v1260 = vpack.c.b16 %v1229, %v1228
    %v1261 = vpack.c.b16 %v1231, %v1230
    %v1262 = vpack.c.b16 %v1233, %v1232
    %v1263 = vpack.c.b16 %v1235, %v1234
    %v1264 = vpack.c.b16 %v1237, %v1236
    %v1265 = vpack.c.b16 %v1239, %v1238
    %v1266 = vpack.c.b16 %v1241, %v1240
    %v1267 = vpack.c.b16 %v1243, %v1242
    %v1268 = vpack.c.b16 %v1245, %v1244
    %v1269 = vpack.c.b16 %v1247, %v1246
    %v1270 = vpack.c.b16 %v1249, %v1248
    %v1271 = vpack.c.b16 %v1251, %v1250
    %v1272 = vpack.c.b16 %v1253, %v1252
    %v1273 = vpack.c.b16 %v1255, %v1254
    %v1274 = vpack.c.b16 %v1257, %v1256
    %v1275 = vpack.c.b16 %v1259, %v1258
    %1292 = vmatpush.bf16.msra.mxu0 %v1267
    %1293 = vmatpush.bf16.msra.mxu0 %v1266
    %1294 = vmatpush.bf16.msra.mxu0 %v1265
    %1295 = vmatpush.bf16.msra.mxu0 %v1264
    %1296 = vmatpush.bf16.msra.mxu0 %v1263
    %1297 = vmatpush.bf16.msra.mxu0 %v1262
    %1298 = vmatpush.bf16.msra.mxu0 %v1261
    %1299 = vmatpush.bf16.msra.mxu0 %v1260
    %1300 = vmatmul.bf16.gmra.mxu0 %v1161
    %v1301 = vpop.f32.mrf.mxu0
    %v1302 = vadd.f32 0.0, %v1301
    %v1303 = vpop.f32.mrf.mxu0
    %v1304 = vadd.f32 0.0, %v1303
    %1305 = vdwg.mxu0
    %1306 = vmatpush.bf16.msra.mxu0 %v1275
    %1307 = vmatpush.bf16.msra.mxu0 %v1274
    %1308 = vmatpush.bf16.msra.mxu0 %v1273
    %1309 = vmatpush.bf16.msra.mxu0 %v1272
    %1310 = vmatpush.bf16.msra.mxu0 %v1271
    %1311 = vmatpush.bf16.msra.mxu0 %v1270
    %1312 = vmatpush.bf16.msra.mxu0 %v1269
    %1313 = vmatpush.bf16.msra.mxu0 %v1268
    %1314 = vmatmul.bf16.gmra.mxu0 %v1162
    %v1315 = vpop.f32.mrf.mxu0
    %v1316 = vadd.f32 %v1302, %v1315
    %v1317 = vpop.f32.mrf.mxu0
    %v1318 = vadd.f32 %v1304, %v1317
    %1319 = vdwg.mxu0
    %v1320 = vpack.c.bf16 %v1316, %v1316
    %v1321 = vpack.c.bf16 %v1318, %v1318
    %v1322 = vpack.c.bf16 %v1195, %v1195
    %v1324 = vpack.i.b16 %v1322, %v1322
    %v1326 = vperm.slane %v1324, 0
    %v1327 = vunpack.c.l.bf16 %v1320
    %v1328 = vunpack.c.l.bf16 %v1321
    %v1329 = vunpack.c.l.bf16 %v1326
    %v1330 = vadd.f32 %v1327, %v1329
    %v1331 = vadd.f32 %v1328, %v1329
    %v1332 = vpack.c.bf16 %v1330, %v1330
    %v1333 = vpack.c.bf16 %v1331, %v1331
    %v1334 = vunpack.c.l.bf16 %v1332
    %v1335 = vunpack.c.l.bf16 %v1333
    %v1336 = vmax.f32 %v1334, 0.0
    %v1337 = vmax.f32 %v1335, 0.0
    %v1338 = vpack.c.bf16 %v1337, %v1336
    %v1339 = vld [vmem:[#allocation10] sm:$0xf]
    %v1340 = vld [vmem:[#allocation10 + $0x4] sm:$0xf]
    %v1341 = vld [vmem:[#allocation10 + $0x8] sm:$0xf]
    %v1342 = vld [vmem:[#allocation10 + $0xc] sm:$0xf]
    %v1343 = vld [vmem:[#allocation10 + $0x10] sm:$0xf]
    %v1344 = vld [vmem:[#allocation10 + $0x14] sm:$0xf]
    %v1345 = vld [vmem:[#allocation10 + $0x18] sm:$0xf]
    %v1346 = vld [vmem:[#allocation10 + $0x1c] sm:$0xf]
    %v1347 = vld [vmem:[#allocation10 + $0x20] sm:$0xf]
    %v1348 = vld [vmem:[#allocation10 + $0x24] sm:$0xf]
    %v1349 = vld [vmem:[#allocation10 + $0x28] sm:$0xf]
    %v1350 = vld [vmem:[#allocation10 + $0x2c] sm:$0xf]
    %v1351 = vld [vmem:[#allocation10 + $0x30] sm:$0xf]
    %v1352 = vld [vmem:[#allocation10 + $0x34] sm:$0xf]
    %v1353 = vld [vmem:[#allocation10 + $0x38] sm:$0xf]
    %v1354 = vld [vmem:[#allocation10 + $0x3c] sm:$0xf]
    %v1355 = vld [vmem:[%s6] sm:$0x1]
    %v1357 = vperm.slane %v1355, 0
    %v1375 = vunpack.c.l.b16 %v1339
    %v1376 = vunpack.c.l.b16 %v1340
    %v1377 = vunpack.c.l.b16 %v1341
    %v1378 = vunpack.c.l.b16 %v1342
    %v1379 = vunpack.c.l.b16 %v1343
    %v1380 = vunpack.c.l.b16 %v1344
    %v1381 = vunpack.c.l.b16 %v1345
    %v1382 = vunpack.c.l.b16 %v1346
    %v1383 = vunpack.c.l.b16 %v1347
    %v1384 = vunpack.c.l.b16 %v1348
    %v1385 = vunpack.c.l.b16 %v1349
    %v1386 = vunpack.c.l.b16 %v1350
    %v1387 = vunpack.c.l.b16 %v1351
    %v1388 = vunpack.c.l.b16 %v1352
    %v1389 = vunpack.c.l.b16 %v1353
    %v1390 = vunpack.c.l.b16 %v1354
    %v1391 = vpack.c.b16 %v1376, %v1375
    %v1392 = vpack.c.b16 %v1378, %v1377
    %v1393 = vpack.c.b16 %v1380, %v1379
    %v1394 = vpack.c.b16 %v1382, %v1381
    %v1395 = vpack.c.b16 %v1384, %v1383
    %v1396 = vpack.c.b16 %v1386, %v1385
    %v1397 = vpack.c.b16 %v1388, %v1387
    %v1398 = vpack.c.b16 %v1390, %v1389
    %1407 = vmatpush.bf16.msra.mxu0 %v1398
    %1408 = vmatpush.bf16.msra.mxu0 %v1397
    %1409 = vmatpush.bf16.msra.mxu0 %v1396
    %1410 = vmatpush.bf16.msra.mxu0 %v1395
    %1411 = vmatpush.bf16.msra.mxu0 %v1394
    %1412 = vmatpush.bf16.msra.mxu0 %v1393
    %1413 = vmatpush.bf16.msra.mxu0 %v1392
    %1414 = vmatpush.bf16.msra.mxu0 %v1391
    %1415 = vmatmul.bf16.gmra.mxu0 %v1338
    %v1416 = vpop.f32.mrf.mxu0
    %v1417 = vadd.f32 %v1357, %v1416
    %v1418 = vpop.f32.mrf.mxu0
    %v1419 = vadd.f32 %v1357, %v1418
    %1420 = vdwg.mxu0
    %1421 = vst [vmem:[#allocation11] sm:$0xff] %v1417
    %1422 = vst [vmem:[#allocation11 + $0x8] sm:$0xff] %v1419
    // Predicated region
    $region50: #{tpu_custom_call.1} parent=1 // pred_check
      _
    $region51: #{tpu_custom_call.1} parent=1 // pred_check_branch
      %1424 = sbr.rel (0) target = $region53
    $region52: #{tpu_custom_call.1} parent=1 // pred_region
      %1426 = vsyncadd [#allocation4], 0
      %s1427 = sshll.u32 [#allocation11], 4
      %s1428 = int_to_ptr.vmem [resolvable:$true] %s1427
      %s1429 = sshll.u32 %s7, 4
      %s1430 = int_to_ptr.hbm [resolvable:$true] %s1429
      %1435 = dma.vmem_to_hbm [thread:$0]  %s1428, 256, %s1430, [#allocation4], 128, 128, 8
    $region53: #{tpu_custom_call.1} parent=1 // pred_fallthru
      _
    // Predicated region
    $region54: #{tpu_custom_call.1} parent=1 // pred_check
      _
    $region55: #{tpu_custom_call.1} parent=1 // pred_check_branch
      %1437 = sbr.rel (0) target = $region57
    $region56: #{tpu_custom_call.1} parent=1 // pred_region
      %1439 = dma.done [#allocation4], 256
    $region57: #{tpu_custom_call.1} parent=1 // pred_fallthru
      _
    %1440 = vsyncpa [#allocation3], 1
    %1441 = vsyncpa [#allocation6], 1
    %1442 = vsyncpa [#allocation9], 1
    %1443 = vsyncpa [#allocation4], 1

</llo_original>
